<compile_context>
chip_gen: v5e
topology: v5e:2x2
jax: 0.10.0
libtpu: 0.0.40
codegen_flags: <defaults>
</compile_context>

<pallas_src>
import math
import numpy as np
import jax
import jax.numpy as jnp
from jax.experimental import pallas as pl
from jax.experimental.pallas import tpu as pltpu

T_SPAN = (0.0, 10.0)
DT = float(T_SPAN[1] - T_SPAN[0])
SQRT3 = math.sqrt(3.0)
SQUARINGS = 6      # scaling-and-squaring steps for the matrix exponential
TAYLOR_ORDER = 8   # Taylor terms for exp of the 2^-SQUARINGS-scaled matrix
LANE_BLOCK = 128   # batch lanes per grid step (lane-dense blocks)


# ----------------------------------------------------------------------------
# Fused kernel:  t (1, Bb)  ->  FCNN  ->  skew S  ->  exp(S)  (n*n, Bb)
# Batch lives on the lane axis throughout.
# ----------------------------------------------------------------------------
def _fused_kernel_factory(n, n_hidden_layers):
    iu, ju = np.triu_indices(n, k=1)                     # row-major upper-tri order
    tri = {(int(a), int(b)): c for c, (a, b) in enumerate(zip(iu, ju))}
    inv_scale = 1.0 / float(2 ** SQUARINGS)

    def bmm(A, Bm):
        # A, Bm: (n, n, Bb);  C[i, k, b] = sum_j A[i, j, b] * Bm[j, k, b]
        # Unrolled broadcast-FMA over j: pure VPU; the MXU is never used for n << 128.
        C = A[:, 0:1, :] * Bm[0:1, :, :]
        for j in range(1, n):
            C = C + A[:, j:j + 1, :] * Bm[j:j + 1, :, :]
        return C

    def kernel(t_ref, w1_ref, b1_ref, wh_ref, bh_ref, wo_ref, bo_ref, o_ref):
        # ---------------- FCNN (batch on lanes) ----------------
        # MarginalFCNN time rescaling: t * (2/dt) - 1, then * sqrt(3)
        x = (t_ref[...] * (2.0 / DT) - 1.0) * SQRT3            # (1, Bb)
        # input layer Linear(1, H): rank-1 outer product -> VPU broadcast FMA
        h = w1_ref[...] * x + b1_ref[...]                      # (H, Bb)
        h = h * jax.nn.sigmoid(h)                              # SiLU
        # hidden layers Linear(H, H) + SiLU (statically unrolled)
        for l in range(n_hidden_layers):
            h = jnp.dot(wh_ref[l], h, preferred_element_type=jnp.float32) + bh_ref[l]
            h = h * jax.nn.sigmoid(h)
        # output layer Linear(H, num_skew)  (output_transform = Identity)
        m = jnp.dot(wo_ref[...], h, preferred_element_type=jnp.float32) + bo_ref[...]
        # m: (num_skew, Bb)

        # -------- skew-symmetric assembly (in registers, no HBM round trip) --------
        zero_row = jnp.zeros_like(m[0:1, :])                   # (1, Bb)
        one_row = jnp.ones_like(m[0:1, :])                     # (1, Bb)
        s_mats, i_mats = [], []
        for i in range(n):
            s_rows, i_rows = [], []
            for j in range(n):
                if i == j:
                    s_rows.append(zero_row)
                    i_rows.append(one_row)
                elif i < j:
                    c = tri[(i, j)]
                    s_rows.append(m[c:c + 1, :])
                    i_rows.append(zero_row)
                else:
                    c = tri[(j, i)]
                    s_rows.append(-m[c:c + 1, :])
                    i_rows.append(zero_row)
            s_mats.append(jnp.concatenate(s_rows, axis=0)[None])   # (1, n, Bb)
            i_mats.append(jnp.concatenate(i_rows, axis=0)[None])   # (1, n, Bb)
        S = jnp.concatenate(s_mats, axis=0)                    # (n, n, Bb)
        eye = jnp.concatenate(i_mats, axis=0)                  # (n, n, Bb), built in-kernel

        # -------- expm via scaling-and-squaring + Taylor (all VPU) --------
        A = S * inv_scale
        E = eye + A
        term = A
        for k in range(2, TAYLOR_ORDER + 1):
            term = bmm(term, A) * (1.0 / k)
            E = E + term
        for _ in range(SQUARINGS):
            E = bmm(E, E)

        # -------- lane-dense store: (n*n, Bb) --------
        for i in range(n):
            o_ref[i * n:(i + 1) * n, :] = E[i]

    return kernel


# ----------------------------------------------------------------------------
# Wrapper: pad batch to full 128-lane blocks (>= 2 "parallel" grid steps for v7x
# megacore), call the fused kernel, then do pure layout plumbing back to (B, n, n).
# ----------------------------------------------------------------------------
def orthogonal_fcnn_forward(t, params, num_outputs):
    w1, b1, wh, bh, wo, bo = params
    B = t.shape[0]
    n = num_outputs
    H = w1.shape[0]
    K = wo.shape[0]
    L = wh.shape[0]

    grid_steps = max(2, pl.cdiv(B, LANE_BLOCK))
    b_pad = grid_steps * LANE_BLOCK
    t_row = jnp.pad(t.astype(jnp.float32).reshape(1, B), ((0, 0), (0, b_pad - B)))

    out_flat = pl.pallas_call(
        _fused_kernel_factory(n, L),
        out_shape=jax.ShapeDtypeStruct((n * n, b_pad), jnp.float32),
        grid=(grid_steps,),
        in_specs=[
            pl.BlockSpec((1, LANE_BLOCK), lambda i: (0, i)),   # t row, batch on lanes
            pl.BlockSpec((H, 1), lambda i: (0, 0)),            # W1  (H, 1)
            pl.BlockSpec((H, 1), lambda i: (0, 0)),            # b1  (H, 1)
            pl.BlockSpec((L, H, H), lambda i: (0, 0, 0)),      # hidden W stack
            pl.BlockSpec((L, H, 1), lambda i: (0, 0, 0)),      # hidden b stack
            pl.BlockSpec((K, H), lambda i: (0, 0)),            # Wout (K, H)
            pl.BlockSpec((K, 1), lambda i: (0, 0)),            # bout (K, 1)
        ],
        out_specs=pl.BlockSpec((n * n, LANE_BLOCK), lambda i: (0, i)),
        compiler_params=pltpu.CompilerParams(
            dimension_semantics=("parallel",)),
    )(t_row, w1, b1, wh, bh, wo, bo)

    # layout plumbing only: (n*n, Bpad) -> (B, n, n)
    return out_flat[:, :B].T.reshape(B, n, n)


# ----------------------------------------------------------------------------
# Parameter init (deterministic, PyTorch nn.Linear-style uniform init).
# Weights are kept in the natural (out_features, in_features) orientation
# because the kernel computes  h_out = W @ h_in + b  with batch on lanes.
# ----------------------------------------------------------------------------
def init_params(key, num_outputs, num_hidden, num_layers):
    num_skew = num_outputs * (num_outputs - 1) // 2
    n_linear = 1 + (num_layers - 1) + 1
    keys = jax.random.split(key, 2 * n_linear)

    def linear(kw, kb, fan_in, fan_out):
        bound = 1.0 / math.sqrt(fan_in)
        W = jax.random.uniform(kw, (fan_out, fan_in), jnp.float32, -bound, bound)
        b = jax.random.uniform(kb, (fan_out,), jnp.float32, -bound, bound)
        return W, b

    k = iter(keys)
    W1, b1 = linear(next(k), next(k), 1, num_hidden)
    Wh_list, bh_list = [], []
    for _ in range(num_layers - 1):
        W, b = linear(next(k), next(k), num_hidden, num_hidden)
        Wh_list.append(W)                 # (H, H)
        bh_list.append(b[:, None])        # (H, 1)
    Wo, bo = linear(next(k), next(k), num_hidden, num_skew)

    return (W1,                           # (H, 1)
            b1[:, None],                  # (H, 1)
            jnp.stack(Wh_list, axis=0),   # (L, H, H)
            jnp.stack(bh_list, axis=0),   # (L, H, 1)
            Wo,                           # (K, H)
            bo[:, None])                  # (K, 1)


# ----------------------------------------------------------------------------
# Pure-JAX reference (batch-on-rows, XLA einsum) for correctness checking.
# ----------------------------------------------------------------------------
def reference_forward(t, params, num_outputs):
    w1, b1, wh, bh, wo, bo = params
    n = num_outputs
    B = t.shape[0]
    x = (t * (2.0 / DT) - 1.0) * SQRT3                        # (B, 1)
    h = jnp.dot(x, w1.T, precision='highest') + b1[:, 0][None, :]
    h = h * jax.nn.sigmoid(h)
    for l in range(wh.shape[0]):
        h = jnp.dot(h, wh[l].T, precision='highest') + bh[l, :, 0][None, :]
        h = h * jax.nn.sigmoid(h)
    m = jnp.dot(h, wo.T, precision='highest') + bo[:, 0][None, :]   # (B, K)
    iu, ju = np.triu_indices(n, k=1)
    S = jnp.zeros((B, n, n), jnp.float32)
    S = S.at[:, iu, ju].set(m).at[:, ju, iu].set(-m)
    A = S / (2.0 ** SQUARINGS)
    E = jnp.eye(n, dtype=jnp.float32)[None] + A
    term = A
    for k in range(2, 16):
        term = jnp.einsum('bij,bjk->bik', term, A, precision='highest') / k
        E = E + term
    for _ in range(SQUARINGS):
        E = jnp.einsum('bij,bjk->bik', E, E, precision='highest')
    return E


if __name__ == "__main__":
    num_outputs = 4
    num_hidden = 32
    num_layers = 2
    batch = 8

    key = jax.random.PRNGKey(0)
    kp, kt = jax.random.split(key)
    params = init_params(kp, num_outputs, num_hidden, num_layers)
    t = jax.random.uniform(kt, (batch, 1), jnp.float32, T_SPAN[0], T_SPAN[1])

    out = orthogonal_fcnn_forward(t, params, num_outputs)
    out = jax.block_until_ready(out)

    assert out.shape == (batch, num_outputs, num_outputs)

    # sanity 1: exp of a skew-symmetric matrix must be orthogonal
    eye = jnp.eye(num_outputs, dtype=jnp.float32)
    ortho_err = jnp.max(jnp.abs(jnp.einsum('bij,bkj->bik', out, out) - eye))
    assert float(ortho_err) < 1e-4, float(ortho_err)

    # sanity 2: matches a pure-JAX/XLA reference of the same forward pass
    ref = reference_forward(t, params, num_outputs)
    ref_err = jnp.max(jnp.abs(out - ref))
    assert float(ref_err) < 5e-4, float(ref_err)

    print("KERNEL_OK")
</pallas_src>

<mosaic_0001>
module attributes {stable_mosaic.version = 11 : i64} {
  func.func @kernel(%arg0: i32, %arg1: memref<1x128xf32, #tpu.memory_space<vmem>>, %arg2: memref<32x1xf32, #tpu.memory_space<vmem>>, %arg3: memref<32x1xf32, #tpu.memory_space<vmem>>, %arg4: memref<1x32x32xf32, #tpu.memory_space<vmem>>, %arg5: memref<1x32x1xf32, #tpu.memory_space<vmem>>, %arg6: memref<6x32xf32, #tpu.memory_space<vmem>>, %arg7: memref<6x1xf32, #tpu.memory_space<vmem>>, %arg8: memref<16x128xf32, #tpu.memory_space<vmem>>) attributes {dimension_semantics = [#tpu.dimension_semantics<parallel>], iteration_bounds = array<i64: 2>, scalar_prefetch = 0 : i64, scratch_operands = 0 : i64, tpu.core_type = #tpu.core_type<tc>, window_params = [{transform_indices = @transform_0, window_bounds = array<i64: 1, 128>}, {pipeline_mode = #tpu.pipeline_mode<synchronous>, transform_indices = @transform_1, window_bounds = array<i64: 32, 1>}, {pipeline_mode = #tpu.pipeline_mode<synchronous>, transform_indices = @transform_2, window_bounds = array<i64: 32, 1>}, {pipeline_mode = #tpu.pipeline_mode<synchronous>, transform_indices = @transform_3, window_bounds = array<i64: 1, 32, 32>}, {pipeline_mode = #tpu.pipeline_mode<synchronous>, transform_indices = @transform_4, window_bounds = array<i64: 1, 32, 1>}, {pipeline_mode = #tpu.pipeline_mode<synchronous>, transform_indices = @transform_5, window_bounds = array<i64: 6, 32>}, {pipeline_mode = #tpu.pipeline_mode<synchronous>, transform_indices = @transform_6, window_bounds = array<i64: 6, 1>}, {transform_indices = @transform_7, window_bounds = array<i64: 16, 128>}]} {
    %c0 = arith.constant 0 : index
    %c0_0 = arith.constant 0 : index
    %0 = vector.load %arg1[%c0, %c0_0] : memref<1x128xf32, #tpu.memory_space<vmem>>, vector<1x128xf32>
    %cst = arith.constant 2.000000e-01 : f32
    %1 = vector.broadcast %cst : f32 to vector<1x128xf32>
    %2 = arith.mulf %0, %1 : vector<1x128xf32>
    %cst_1 = arith.constant 1.000000e+00 : f32
    %3 = vector.broadcast %cst_1 : f32 to vector<1x128xf32>
    %4 = arith.subf %2, %3 : vector<1x128xf32>
    %cst_2 = arith.constant 1.73205078 : f32
    %5 = vector.broadcast %cst_2 : f32 to vector<1x128xf32>
    %6 = arith.mulf %4, %5 : vector<1x128xf32>
    %c0_3 = arith.constant 0 : index
    %c0_4 = arith.constant 0 : index
    %7 = vector.load %arg2[%c0_3, %c0_4] : memref<32x1xf32, #tpu.memory_space<vmem>>, vector<32x1xf32>
    %8 = vector.broadcast %7 : vector<32x1xf32> to vector<32x128xf32>
    %9 = vector.broadcast %6 : vector<1x128xf32> to vector<32x128xf32>
    %10 = arith.mulf %8, %9 : vector<32x128xf32>
    %c0_5 = arith.constant 0 : index
    %c0_6 = arith.constant 0 : index
    %11 = vector.load %arg3[%c0_5, %c0_6] : memref<32x1xf32, #tpu.memory_space<vmem>>, vector<32x1xf32>
    %12 = vector.broadcast %11 : vector<32x1xf32> to vector<32x128xf32>
    %13 = arith.addf %10, %12 : vector<32x128xf32>
    %14 = arith.negf %13 : vector<32x128xf32>
    %15 = math.exp %14 : vector<32x128xf32>
    %cst_7 = arith.constant 1.000000e+00 : f32
    %16 = vector.broadcast %cst_7 : f32 to vector<32x128xf32>
    %17 = arith.addf %16, %15 : vector<32x128xf32>
    %18 = arith.divf %16, %17 : vector<32x128xf32>
    %19 = arith.mulf %13, %18 : vector<32x128xf32>
    %c0_8 = arith.constant 0 : index
    %c0_9 = arith.constant 0 : index
    %c0_10 = arith.constant 0 : index
    %20 = vector.load %arg4[%c0_8, %c0_9, %c0_10] : memref<1x32x32xf32, #tpu.memory_space<vmem>>, vector<1x32x32xf32>
    %21 = vector.shape_cast %20 : vector<1x32x32xf32> to vector<32x32xf32>
    %cst_11 = arith.constant dense<0.000000e+00> : vector<32x128xf32>
    %22 = tpu.matmul %21, %19, %cst_11 {dimension_numbers = #tpu.dot_dimension_numbers<[1], [0], [0], [1], [0, 0, 1, 1], [], []>} : vector<32x32xf32>, vector<32x128xf32>, vector<32x128xf32> -> vector<32x128xf32>
    %c0_12 = arith.constant 0 : index
    %c0_13 = arith.constant 0 : index
    %c0_14 = arith.constant 0 : index
    %23 = vector.load %arg5[%c0_12, %c0_13, %c0_14] : memref<1x32x1xf32, #tpu.memory_space<vmem>>, vector<1x32x1xf32>
    %24 = vector.shape_cast %23 : vector<1x32x1xf32> to vector<32x1xf32>
    %25 = vector.broadcast %24 : vector<32x1xf32> to vector<32x128xf32>
    %26 = arith.addf %22, %25 : vector<32x128xf32>
    %27 = arith.negf %26 : vector<32x128xf32>
    %28 = math.exp %27 : vector<32x128xf32>
    %cst_15 = arith.constant 1.000000e+00 : f32
    %29 = vector.broadcast %cst_15 : f32 to vector<32x128xf32>
    %30 = arith.addf %29, %28 : vector<32x128xf32>
    %31 = arith.divf %29, %30 : vector<32x128xf32>
    %32 = arith.mulf %26, %31 : vector<32x128xf32>
    %c0_16 = arith.constant 0 : index
    %c0_17 = arith.constant 0 : index
    %33 = vector.load %arg6[%c0_16, %c0_17] : memref<6x32xf32, #tpu.memory_space<vmem>>, vector<6x32xf32>
    %cst_18 = arith.constant dense<0.000000e+00> : vector<6x128xf32>
    %34 = tpu.matmul %33, %32, %cst_18 {dimension_numbers = #tpu.dot_dimension_numbers<[1], [0], [0], [1], [0, 0, 1, 1], [], []>} : vector<6x32xf32>, vector<32x128xf32>, vector<6x128xf32> -> vector<6x128xf32>
    %c0_19 = arith.constant 0 : index
    %c0_20 = arith.constant 0 : index
    %35 = vector.load %arg7[%c0_19, %c0_20] : memref<6x1xf32, #tpu.memory_space<vmem>>, vector<6x1xf32>
    %36 = vector.broadcast %35 : vector<6x1xf32> to vector<6x128xf32>
    %37 = arith.addf %34, %36 : vector<6x128xf32>
    %cst_21 = arith.constant 0.000000e+00 : f32
    %38 = vector.broadcast %cst_21 : f32 to vector<1x128xf32>
    %cst_22 = arith.constant 1.000000e+00 : f32
    %39 = vector.broadcast %cst_22 : f32 to vector<1x128xf32>
    %40 = vector.extract_strided_slice %37 {offsets = [0, 0], sizes = [1, 128], strides = [1, 1]} : vector<6x128xf32> to vector<1x128xf32>
    %41 = vector.extract_strided_slice %37 {offsets = [1, 0], sizes = [1, 128], strides = [1, 1]} : vector<6x128xf32> to vector<1x128xf32>
    %42 = vector.extract_strided_slice %37 {offsets = [2, 0], sizes = [1, 128], strides = [1, 1]} : vector<6x128xf32> to vector<1x128xf32>
    %43 = tpu.concatenate %38, %40, %41, %42 in 0 : vector<1x128xf32>, vector<1x128xf32>, vector<1x128xf32>, vector<1x128xf32> -> vector<4x128xf32>
    %44 = vector.shape_cast %43 : vector<4x128xf32> to vector<1x4x128xf32>
    %45 = tpu.concatenate %39, %38, %38, %38 in 0 : vector<1x128xf32>, vector<1x128xf32>, vector<1x128xf32>, vector<1x128xf32> -> vector<4x128xf32>
    %46 = vector.shape_cast %45 : vector<4x128xf32> to vector<1x4x128xf32>
    %47 = vector.extract_strided_slice %37 {offsets = [0, 0], sizes = [1, 128], strides = [1, 1]} : vector<6x128xf32> to vector<1x128xf32>
    %cst_23 = arith.constant 0.000000e+00 : f32
    %48 = vector.broadcast %cst_23 : f32 to vector<1x128xf32>
    %49 = arith.subf %48, %47 : vector<1x128xf32>
    %50 = vector.extract_strided_slice %37 {offsets = [3, 0], sizes = [1, 128], strides = [1, 1]} : vector<6x128xf32> to vector<1x128xf32>
    %51 = vector.extract_strided_slice %37 {offsets = [4, 0], sizes = [1, 128], strides = [1, 1]} : vector<6x128xf32> to vector<1x128xf32>
    %52 = tpu.concatenate %49, %38, %50, %51 in 0 : vector<1x128xf32>, vector<1x128xf32>, vector<1x128xf32>, vector<1x128xf32> -> vector<4x128xf32>
    %53 = vector.shape_cast %52 : vector<4x128xf32> to vector<1x4x128xf32>
    %54 = tpu.concatenate %38, %39, %38, %38 in 0 : vector<1x128xf32>, vector<1x128xf32>, vector<1x128xf32>, vector<1x128xf32> -> vector<4x128xf32>
    %55 = vector.shape_cast %54 : vector<4x128xf32> to vector<1x4x128xf32>
    %56 = vector.extract_strided_slice %37 {offsets = [1, 0], sizes = [1, 128], strides = [1, 1]} : vector<6x128xf32> to vector<1x128xf32>
    %cst_24 = arith.constant 0.000000e+00 : f32
    %57 = vector.broadcast %cst_24 : f32 to vector<1x128xf32>
    %58 = arith.subf %57, %56 : vector<1x128xf32>
    %59 = vector.extract_strided_slice %37 {offsets = [3, 0], sizes = [1, 128], strides = [1, 1]} : vector<6x128xf32> to vector<1x128xf32>
    %cst_25 = arith.constant 0.000000e+00 : f32
    %60 = vector.broadcast %cst_25 : f32 to vector<1x128xf32>
    %61 = arith.subf %60, %59 : vector<1x128xf32>
    %62 = vector.extract_strided_slice %37 {offsets = [5, 0], sizes = [1, 128], strides = [1, 1]} : vector<6x128xf32> to vector<1x128xf32>
    %63 = tpu.concatenate %58, %61, %38, %62 in 0 : vector<1x128xf32>, vector<1x128xf32>, vector<1x128xf32>, vector<1x128xf32> -> vector<4x128xf32>
    %64 = vector.shape_cast %63 : vector<4x128xf32> to vector<1x4x128xf32>
    %65 = tpu.concatenate %38, %38, %39, %38 in 0 : vector<1x128xf32>, vector<1x128xf32>, vector<1x128xf32>, vector<1x128xf32> -> vector<4x128xf32>
    %66 = vector.shape_cast %65 : vector<4x128xf32> to vector<1x4x128xf32>
    %67 = vector.extract_strided_slice %37 {offsets = [2, 0], sizes = [1, 128], strides = [1, 1]} : vector<6x128xf32> to vector<1x128xf32>
    %cst_26 = arith.constant 0.000000e+00 : f32
    %68 = vector.broadcast %cst_26 : f32 to vector<1x128xf32>
    %69 = arith.subf %68, %67 : vector<1x128xf32>
    %70 = vector.extract_strided_slice %37 {offsets = [4, 0], sizes = [1, 128], strides = [1, 1]} : vector<6x128xf32> to vector<1x128xf32>
    %cst_27 = arith.constant 0.000000e+00 : f32
    %71 = vector.broadcast %cst_27 : f32 to vector<1x128xf32>
    %72 = arith.subf %71, %70 : vector<1x128xf32>
    %73 = vector.extract_strided_slice %37 {offsets = [5, 0], sizes = [1, 128], strides = [1, 1]} : vector<6x128xf32> to vector<1x128xf32>
    %cst_28 = arith.constant 0.000000e+00 : f32
    %74 = vector.broadcast %cst_28 : f32 to vector<1x128xf32>
    %75 = arith.subf %74, %73 : vector<1x128xf32>
    %76 = tpu.concatenate %69, %72, %75, %38 in 0 : vector<1x128xf32>, vector<1x128xf32>, vector<1x128xf32>, vector<1x128xf32> -> vector<4x128xf32>
    %77 = vector.shape_cast %76 : vector<4x128xf32> to vector<1x4x128xf32>
    %78 = tpu.concatenate %38, %38, %38, %39 in 0 : vector<1x128xf32>, vector<1x128xf32>, vector<1x128xf32>, vector<1x128xf32> -> vector<4x128xf32>
    %79 = vector.shape_cast %78 : vector<4x128xf32> to vector<1x4x128xf32>
    %80 = tpu.concatenate %44, %53, %64, %77 in 0 : vector<1x4x128xf32>, vector<1x4x128xf32>, vector<1x4x128xf32>, vector<1x4x128xf32> -> vector<4x4x128xf32>
    %81 = tpu.concatenate %46, %55, %66, %79 in 0 : vector<1x4x128xf32>, vector<1x4x128xf32>, vector<1x4x128xf32>, vector<1x4x128xf32> -> vector<4x4x128xf32>
    %cst_29 = arith.constant 1.562500e-02 : f32
    %82 = vector.broadcast %cst_29 : f32 to vector<4x4x128xf32>
    %83 = arith.mulf %80, %82 : vector<4x4x128xf32>
    %84 = arith.addf %81, %83 : vector<4x4x128xf32>
    %85 = vector.extract_strided_slice %83 {offsets = [0, 0, 0], sizes = [4, 1, 128], strides = [1, 1, 1]} : vector<4x4x128xf32> to vector<4x1x128xf32>
    %86 = vector.extract_strided_slice %83 {offsets = [0, 0, 0], sizes = [1, 4, 128], strides = [1, 1, 1]} : vector<4x4x128xf32> to vector<1x4x128xf32>
    %87 = vector.broadcast %85 : vector<4x1x128xf32> to vector<4x4x128xf32>
    %88 = vector.broadcast %86 : vector<1x4x128xf32> to vector<4x4x128xf32>
    %89 = arith.mulf %87, %88 : vector<4x4x128xf32>
    %90 = vector.extract_strided_slice %83 {offsets = [0, 1, 0], sizes = [4, 1, 128], strides = [1, 1, 1]} : vector<4x4x128xf32> to vector<4x1x128xf32>
    %91 = vector.extract_strided_slice %83 {offsets = [1, 0, 0], sizes = [1, 4, 128], strides = [1, 1, 1]} : vector<4x4x128xf32> to vector<1x4x128xf32>
    %92 = vector.broadcast %90 : vector<4x1x128xf32> to vector<4x4x128xf32>
    %93 = vector.broadcast %91 : vector<1x4x128xf32> to vector<4x4x128xf32>
    %94 = arith.mulf %92, %93 : vector<4x4x128xf32>
    %95 = arith.addf %89, %94 : vector<4x4x128xf32>
    %96 = vector.extract_strided_slice %83 {offsets = [0, 2, 0], sizes = [4, 1, 128], strides = [1, 1, 1]} : vector<4x4x128xf32> to vector<4x1x128xf32>
    %97 = vector.extract_strided_slice %83 {offsets = [2, 0, 0], sizes = [1, 4, 128], strides = [1, 1, 1]} : vector<4x4x128xf32> to vector<1x4x128xf32>
    %98 = vector.broadcast %96 : vector<4x1x128xf32> to vector<4x4x128xf32>
    %99 = vector.broadcast %97 : vector<1x4x128xf32> to vector<4x4x128xf32>
    %100 = arith.mulf %98, %99 : vector<4x4x128xf32>
    %101 = arith.addf %95, %100 : vector<4x4x128xf32>
    %102 = vector.extract_strided_slice %83 {offsets = [0, 3, 0], sizes = [4, 1, 128], strides = [1, 1, 1]} : vector<4x4x128xf32> to vector<4x1x128xf32>
    %103 = vector.extract_strided_slice %83 {offsets = [3, 0, 0], sizes = [1, 4, 128], strides = [1, 1, 1]} : vector<4x4x128xf32> to vector<1x4x128xf32>
    %104 = vector.broadcast %102 : vector<4x1x128xf32> to vector<4x4x128xf32>
    %105 = vector.broadcast %103 : vector<1x4x128xf32> to vector<4x4x128xf32>
    %106 = arith.mulf %104, %105 : vector<4x4x128xf32>
    %107 = arith.addf %101, %106 : vector<4x4x128xf32>
    %cst_30 = arith.constant 5.000000e-01 : f32
    %108 = vector.broadcast %cst_30 : f32 to vector<4x4x128xf32>
    %109 = arith.mulf %107, %108 : vector<4x4x128xf32>
    %110 = arith.addf %84, %109 : vector<4x4x128xf32>
    %111 = vector.extract_strided_slice %109 {offsets = [0, 0, 0], sizes = [4, 1, 128], strides = [1, 1, 1]} : vector<4x4x128xf32> to vector<4x1x128xf32>
    %112 = vector.extract_strided_slice %83 {offsets = [0, 0, 0], sizes = [1, 4, 128], strides = [1, 1, 1]} : vector<4x4x128xf32> to vector<1x4x128xf32>
    %113 = vector.broadcast %111 : vector<4x1x128xf32> to vector<4x4x128xf32>
    %114 = vector.broadcast %112 : vector<1x4x128xf32> to vector<4x4x128xf32>
    %115 = arith.mulf %113, %114 : vector<4x4x128xf32>
    %116 = vector.extract_strided_slice %109 {offsets = [0, 1, 0], sizes = [4, 1, 128], strides = [1, 1, 1]} : vector<4x4x128xf32> to vector<4x1x128xf32>
    %117 = vector.extract_strided_slice %83 {offsets = [1, 0, 0], sizes = [1, 4, 128], strides = [1, 1, 1]} : vector<4x4x128xf32> to vector<1x4x128xf32>
    %118 = vector.broadcast %116 : vector<4x1x128xf32> to vector<4x4x128xf32>
    %119 = vector.broadcast %117 : vector<1x4x128xf32> to vector<4x4x128xf32>
    %120 = arith.mulf %118, %119 : vector<4x4x128xf32>
    %121 = arith.addf %115, %120 : vector<4x4x128xf32>
    %122 = vector.extract_strided_slice %109 {offsets = [0, 2, 0], sizes = [4, 1, 128], strides = [1, 1, 1]} : vector<4x4x128xf32> to vector<4x1x128xf32>
    %123 = vector.extract_strided_slice %83 {offsets = [2, 0, 0], sizes = [1, 4, 128], strides = [1, 1, 1]} : vector<4x4x128xf32> to vector<1x4x128xf32>
    %124 = vector.broadcast %122 : vector<4x1x128xf32> to vector<4x4x128xf32>
    %125 = vector.broadcast %123 : vector<1x4x128xf32> to vector<4x4x128xf32>
    %126 = arith.mulf %124, %125 : vector<4x4x128xf32>
    %127 = arith.addf %121, %126 : vector<4x4x128xf32>
    %128 = vector.extract_strided_slice %109 {offsets = [0, 3, 0], sizes = [4, 1, 128], strides = [1, 1, 1]} : vector<4x4x128xf32> to vector<4x1x128xf32>
    %129 = vector.extract_strided_slice %83 {offsets = [3, 0, 0], sizes = [1, 4, 128], strides = [1, 1, 1]} : vector<4x4x128xf32> to vector<1x4x128xf32>
    %130 = vector.broadcast %128 : vector<4x1x128xf32> to vector<4x4x128xf32>
    %131 = vector.broadcast %129 : vector<1x4x128xf32> to vector<4x4x128xf32>
    %132 = arith.mulf %130, %131 : vector<4x4x128xf32>
    %133 = arith.addf %127, %132 : vector<4x4x128xf32>
    %cst_31 = arith.constant 0.333333343 : f32
    %134 = vector.broadcast %cst_31 : f32 to vector<4x4x128xf32>
    %135 = arith.mulf %133, %134 : vector<4x4x128xf32>
    %136 = arith.addf %110, %135 : vector<4x4x128xf32>
    %137 = vector.extract_strided_slice %135 {offsets = [0, 0, 0], sizes = [4, 1, 128], strides = [1, 1, 1]} : vector<4x4x128xf32> to vector<4x1x128xf32>
    %138 = vector.extract_strided_slice %83 {offsets = [0, 0, 0], sizes = [1, 4, 128], strides = [1, 1, 1]} : vector<4x4x128xf32> to vector<1x4x128xf32>
    %139 = vector.broadcast %137 : vector<4x1x128xf32> to vector<4x4x128xf32>
    %140 = vector.broadcast %138 : vector<1x4x128xf32> to vector<4x4x128xf32>
    %141 = arith.mulf %139, %140 : vector<4x4x128xf32>
    %142 = vector.extract_strided_slice %135 {offsets = [0, 1, 0], sizes = [4, 1, 128], strides = [1, 1, 1]} : vector<4x4x128xf32> to vector<4x1x128xf32>
    %143 = vector.extract_strided_slice %83 {offsets = [1, 0, 0], sizes = [1, 4, 128], strides = [1, 1, 1]} : vector<4x4x128xf32> to vector<1x4x128xf32>
    %144 = vector.broadcast %142 : vector<4x1x128xf32> to vector<4x4x128xf32>
    %145 = vector.broadcast %143 : vector<1x4x128xf32> to vector<4x4x128xf32>
    %146 = arith.mulf %144, %145 : vector<4x4x128xf32>
    %147 = arith.addf %141, %146 : vector<4x4x128xf32>
    %148 = vector.extract_strided_slice %135 {offsets = [0, 2, 0], sizes = [4, 1, 128], strides = [1, 1, 1]} : vector<4x4x128xf32> to vector<4x1x128xf32>
    %149 = vector.extract_strided_slice %83 {offsets = [2, 0, 0], sizes = [1, 4, 128], strides = [1, 1, 1]} : vector<4x4x128xf32> to vector<1x4x128xf32>
    %150 = vector.broadcast %148 : vector<4x1x128xf32> to vector<4x4x128xf32>
    %151 = vector.broadcast %149 : vector<1x4x128xf32> to vector<4x4x128xf32>
    %152 = arith.mulf %150, %151 : vector<4x4x128xf32>
    %153 = arith.addf %147, %152 : vector<4x4x128xf32>
    %154 = vector.extract_strided_slice %135 {offsets = [0, 3, 0], sizes = [4, 1, 128], strides = [1, 1, 1]} : vector<4x4x128xf32> to vector<4x1x128xf32>
    %155 = vector.extract_strided_slice %83 {offsets = [3, 0, 0], sizes = [1, 4, 128], strides = [1, 1, 1]} : vector<4x4x128xf32> to vector<1x4x128xf32>
    %156 = vector.broadcast %154 : vector<4x1x128xf32> to vector<4x4x128xf32>
    %157 = vector.broadcast %155 : vector<1x4x128xf32> to vector<4x4x128xf32>
    %158 = arith.mulf %156, %157 : vector<4x4x128xf32>
    %159 = arith.addf %153, %158 : vector<4x4x128xf32>
    %cst_32 = arith.constant 2.500000e-01 : f32
    %160 = vector.broadcast %cst_32 : f32 to vector<4x4x128xf32>
    %161 = arith.mulf %159, %160 : vector<4x4x128xf32>
    %162 = arith.addf %136, %161 : vector<4x4x128xf32>
    %163 = vector.extract_strided_slice %161 {offsets = [0, 0, 0], sizes = [4, 1, 128], strides = [1, 1, 1]} : vector<4x4x128xf32> to vector<4x1x128xf32>
    %164 = vector.extract_strided_slice %83 {offsets = [0, 0, 0], sizes = [1, 4, 128], strides = [1, 1, 1]} : vector<4x4x128xf32> to vector<1x4x128xf32>
    %165 = vector.broadcast %163 : vector<4x1x128xf32> to vector<4x4x128xf32>
    %166 = vector.broadcast %164 : vector<1x4x128xf32> to vector<4x4x128xf32>
    %167 = arith.mulf %165, %166 : vector<4x4x128xf32>
    %168 = vector.extract_strided_slice %161 {offsets = [0, 1, 0], sizes = [4, 1, 128], strides = [1, 1, 1]} : vector<4x4x128xf32> to vector<4x1x128xf32>
    %169 = vector.extract_strided_slice %83 {offsets = [1, 0, 0], sizes = [1, 4, 128], strides = [1, 1, 1]} : vector<4x4x128xf32> to vector<1x4x128xf32>
    %170 = vector.broadcast %168 : vector<4x1x128xf32> to vector<4x4x128xf32>
    %171 = vector.broadcast %169 : vector<1x4x128xf32> to vector<4x4x128xf32>
    %172 = arith.mulf %170, %171 : vector<4x4x128xf32>
    %173 = arith.addf %167, %172 : vector<4x4x128xf32>
    %174 = vector.extract_strided_slice %161 {offsets = [0, 2, 0], sizes = [4, 1, 128], strides = [1, 1, 1]} : vector<4x4x128xf32> to vector<4x1x128xf32>
    %175 = vector.extract_strided_slice %83 {offsets = [2, 0, 0], sizes = [1, 4, 128], strides = [1, 1, 1]} : vector<4x4x128xf32> to vector<1x4x128xf32>
    %176 = vector.broadcast %174 : vector<4x1x128xf32> to vector<4x4x128xf32>
    %177 = vector.broadcast %175 : vector<1x4x128xf32> to vector<4x4x128xf32>
    %178 = arith.mulf %176, %177 : vector<4x4x128xf32>
    %179 = arith.addf %173, %178 : vector<4x4x128xf32>
    %180 = vector.extract_strided_slice %161 {offsets = [0, 3, 0], sizes = [4, 1, 128], strides = [1, 1, 1]} : vector<4x4x128xf32> to vector<4x1x128xf32>
    %181 = vector.extract_strided_slice %83 {offsets = [3, 0, 0], sizes = [1, 4, 128], strides = [1, 1, 1]} : vector<4x4x128xf32> to vector<1x4x128xf32>
    %182 = vector.broadcast %180 : vector<4x1x128xf32> to vector<4x4x128xf32>
    %183 = vector.broadcast %181 : vector<1x4x128xf32> to vector<4x4x128xf32>
    %184 = arith.mulf %182, %183 : vector<4x4x128xf32>
    %185 = arith.addf %179, %184 : vector<4x4x128xf32>
    %cst_33 = arith.constant 2.000000e-01 : f32
    %186 = vector.broadcast %cst_33 : f32 to vector<4x4x128xf32>
    %187 = arith.mulf %185, %186 : vector<4x4x128xf32>
    %188 = arith.addf %162, %187 : vector<4x4x128xf32>
    %189 = vector.extract_strided_slice %187 {offsets = [0, 0, 0], sizes = [4, 1, 128], strides = [1, 1, 1]} : vector<4x4x128xf32> to vector<4x1x128xf32>
    %190 = vector.extract_strided_slice %83 {offsets = [0, 0, 0], sizes = [1, 4, 128], strides = [1, 1, 1]} : vector<4x4x128xf32> to vector<1x4x128xf32>
    %191 = vector.broadcast %189 : vector<4x1x128xf32> to vector<4x4x128xf32>
    %192 = vector.broadcast %190 : vector<1x4x128xf32> to vector<4x4x128xf32>
    %193 = arith.mulf %191, %192 : vector<4x4x128xf32>
    %194 = vector.extract_strided_slice %187 {offsets = [0, 1, 0], sizes = [4, 1, 128], strides = [1, 1, 1]} : vector<4x4x128xf32> to vector<4x1x128xf32>
    %195 = vector.extract_strided_slice %83 {offsets = [1, 0, 0], sizes = [1, 4, 128], strides = [1, 1, 1]} : vector<4x4x128xf32> to vector<1x4x128xf32>
    %196 = vector.broadcast %194 : vector<4x1x128xf32> to vector<4x4x128xf32>
    %197 = vector.broadcast %195 : vector<1x4x128xf32> to vector<4x4x128xf32>
    %198 = arith.mulf %196, %197 : vector<4x4x128xf32>
    %199 = arith.addf %193, %198 : vector<4x4x128xf32>
    %200 = vector.extract_strided_slice %187 {offsets = [0, 2, 0], sizes = [4, 1, 128], strides = [1, 1, 1]} : vector<4x4x128xf32> to vector<4x1x128xf32>
    %201 = vector.extract_strided_slice %83 {offsets = [2, 0, 0], sizes = [1, 4, 128], strides = [1, 1, 1]} : vector<4x4x128xf32> to vector<1x4x128xf32>
    %202 = vector.broadcast %200 : vector<4x1x128xf32> to vector<4x4x128xf32>
    %203 = vector.broadcast %201 : vector<1x4x128xf32> to vector<4x4x128xf32>
    %204 = arith.mulf %202, %203 : vector<4x4x128xf32>
    %205 = arith.addf %199, %204 : vector<4x4x128xf32>
    %206 = vector.extract_strided_slice %187 {offsets = [0, 3, 0], sizes = [4, 1, 128], strides = [1, 1, 1]} : vector<4x4x128xf32> to vector<4x1x128xf32>
    %207 = vector.extract_strided_slice %83 {offsets = [3, 0, 0], sizes = [1, 4, 128], strides = [1, 1, 1]} : vector<4x4x128xf32> to vector<1x4x128xf32>
    %208 = vector.broadcast %206 : vector<4x1x128xf32> to vector<4x4x128xf32>
    %209 = vector.broadcast %207 : vector<1x4x128xf32> to vector<4x4x128xf32>
    %210 = arith.mulf %208, %209 : vector<4x4x128xf32>
    %211 = arith.addf %205, %210 : vector<4x4x128xf32>
    %cst_34 = arith.constant 0.166666672 : f32
    %212 = vector.broadcast %cst_34 : f32 to vector<4x4x128xf32>
    %213 = arith.mulf %211, %212 : vector<4x4x128xf32>
    %214 = arith.addf %188, %213 : vector<4x4x128xf32>
    %215 = vector.extract_strided_slice %213 {offsets = [0, 0, 0], sizes = [4, 1, 128], strides = [1, 1, 1]} : vector<4x4x128xf32> to vector<4x1x128xf32>
    %216 = vector.extract_strided_slice %83 {offsets = [0, 0, 0], sizes = [1, 4, 128], strides = [1, 1, 1]} : vector<4x4x128xf32> to vector<1x4x128xf32>
    %217 = vector.broadcast %215 : vector<4x1x128xf32> to vector<4x4x128xf32>
    %218 = vector.broadcast %216 : vector<1x4x128xf32> to vector<4x4x128xf32>
    %219 = arith.mulf %217, %218 : vector<4x4x128xf32>
    %220 = vector.extract_strided_slice %213 {offsets = [0, 1, 0], sizes = [4, 1, 128], strides = [1, 1, 1]} : vector<4x4x128xf32> to vector<4x1x128xf32>
    %221 = vector.extract_strided_slice %83 {offsets = [1, 0, 0], sizes = [1, 4, 128], strides = [1, 1, 1]} : vector<4x4x128xf32> to vector<1x4x128xf32>
    %222 = vector.broadcast %220 : vector<4x1x128xf32> to vector<4x4x128xf32>
    %223 = vector.broadcast %221 : vector<1x4x128xf32> to vector<4x4x128xf32>
    %224 = arith.mulf %222, %223 : vector<4x4x128xf32>
    %225 = arith.addf %219, %224 : vector<4x4x128xf32>
    %226 = vector.extract_strided_slice %213 {offsets = [0, 2, 0], sizes = [4, 1, 128], strides = [1, 1, 1]} : vector<4x4x128xf32> to vector<4x1x128xf32>
    %227 = vector.extract_strided_slice %83 {offsets = [2, 0, 0], sizes = [1, 4, 128], strides = [1, 1, 1]} : vector<4x4x128xf32> to vector<1x4x128xf32>
    %228 = vector.broadcast %226 : vector<4x1x128xf32> to vector<4x4x128xf32>
    %229 = vector.broadcast %227 : vector<1x4x128xf32> to vector<4x4x128xf32>
    %230 = arith.mulf %228, %229 : vector<4x4x128xf32>
    %231 = arith.addf %225, %230 : vector<4x4x128xf32>
    %232 = vector.extract_strided_slice %213 {offsets = [0, 3, 0], sizes = [4, 1, 128], strides = [1, 1, 1]} : vector<4x4x128xf32> to vector<4x1x128xf32>
    %233 = vector.extract_strided_slice %83 {offsets = [3, 0, 0], sizes = [1, 4, 128], strides = [1, 1, 1]} : vector<4x4x128xf32> to vector<1x4x128xf32>
    %234 = vector.broadcast %232 : vector<4x1x128xf32> to vector<4x4x128xf32>
    %235 = vector.broadcast %233 : vector<1x4x128xf32> to vector<4x4x128xf32>
    %236 = arith.mulf %234, %235 : vector<4x4x128xf32>
    %237 = arith.addf %231, %236 : vector<4x4x128xf32>
    %cst_35 = arith.constant 0.142857149 : f32
    %238 = vector.broadcast %cst_35 : f32 to vector<4x4x128xf32>
    %239 = arith.mulf %237, %238 : vector<4x4x128xf32>
    %240 = arith.addf %214, %239 : vector<4x4x128xf32>
    %241 = vector.extract_strided_slice %239 {offsets = [0, 0, 0], sizes = [4, 1, 128], strides = [1, 1, 1]} : vector<4x4x128xf32> to vector<4x1x128xf32>
    %242 = vector.extract_strided_slice %83 {offsets = [0, 0, 0], sizes = [1, 4, 128], strides = [1, 1, 1]} : vector<4x4x128xf32> to vector<1x4x128xf32>
    %243 = vector.broadcast %241 : vector<4x1x128xf32> to vector<4x4x128xf32>
    %244 = vector.broadcast %242 : vector<1x4x128xf32> to vector<4x4x128xf32>
    %245 = arith.mulf %243, %244 : vector<4x4x128xf32>
    %246 = vector.extract_strided_slice %239 {offsets = [0, 1, 0], sizes = [4, 1, 128], strides = [1, 1, 1]} : vector<4x4x128xf32> to vector<4x1x128xf32>
    %247 = vector.extract_strided_slice %83 {offsets = [1, 0, 0], sizes = [1, 4, 128], strides = [1, 1, 1]} : vector<4x4x128xf32> to vector<1x4x128xf32>
    %248 = vector.broadcast %246 : vector<4x1x128xf32> to vector<4x4x128xf32>
    %249 = vector.broadcast %247 : vector<1x4x128xf32> to vector<4x4x128xf32>
    %250 = arith.mulf %248, %249 : vector<4x4x128xf32>
    %251 = arith.addf %245, %250 : vector<4x4x128xf32>
    %252 = vector.extract_strided_slice %239 {offsets = [0, 2, 0], sizes = [4, 1, 128], strides = [1, 1, 1]} : vector<4x4x128xf32> to vector<4x1x128xf32>
    %253 = vector.extract_strided_slice %83 {offsets = [2, 0, 0], sizes = [1, 4, 128], strides = [1, 1, 1]} : vector<4x4x128xf32> to vector<1x4x128xf32>
    %254 = vector.broadcast %252 : vector<4x1x128xf32> to vector<4x4x128xf32>
    %255 = vector.broadcast %253 : vector<1x4x128xf32> to vector<4x4x128xf32>
    %256 = arith.mulf %254, %255 : vector<4x4x128xf32>
    %257 = arith.addf %251, %256 : vector<4x4x128xf32>
    %258 = vector.extract_strided_slice %239 {offsets = [0, 3, 0], sizes = [4, 1, 128], strides = [1, 1, 1]} : vector<4x4x128xf32> to vector<4x1x128xf32>
    %259 = vector.extract_strided_slice %83 {offsets = [3, 0, 0], sizes = [1, 4, 128], strides = [1, 1, 1]} : vector<4x4x128xf32> to vector<1x4x128xf32>
    %260 = vector.broadcast %258 : vector<4x1x128xf32> to vector<4x4x128xf32>
    %261 = vector.broadcast %259 : vector<1x4x128xf32> to vector<4x4x128xf32>
    %262 = arith.mulf %260, %261 : vector<4x4x128xf32>
    %263 = arith.addf %257, %262 : vector<4x4x128xf32>
    %cst_36 = arith.constant 1.250000e-01 : f32
    %264 = vector.broadcast %cst_36 : f32 to vector<4x4x128xf32>
    %265 = arith.mulf %263, %264 : vector<4x4x128xf32>
    %266 = arith.addf %240, %265 : vector<4x4x128xf32>
    %267 = vector.extract_strided_slice %266 {offsets = [0, 0, 0], sizes = [4, 1, 128], strides = [1, 1, 1]} : vector<4x4x128xf32> to vector<4x1x128xf32>
    %268 = vector.extract_strided_slice %266 {offsets = [0, 0, 0], sizes = [1, 4, 128], strides = [1, 1, 1]} : vector<4x4x128xf32> to vector<1x4x128xf32>
    %269 = vector.broadcast %267 : vector<4x1x128xf32> to vector<4x4x128xf32>
    %270 = vector.broadcast %268 : vector<1x4x128xf32> to vector<4x4x128xf32>
    %271 = arith.mulf %269, %270 : vector<4x4x128xf32>
    %272 = vector.extract_strided_slice %266 {offsets = [0, 1, 0], sizes = [4, 1, 128], strides = [1, 1, 1]} : vector<4x4x128xf32> to vector<4x1x128xf32>
    %273 = vector.extract_strided_slice %266 {offsets = [1, 0, 0], sizes = [1, 4, 128], strides = [1, 1, 1]} : vector<4x4x128xf32> to vector<1x4x128xf32>
    %274 = vector.broadcast %272 : vector<4x1x128xf32> to vector<4x4x128xf32>
    %275 = vector.broadcast %273 : vector<1x4x128xf32> to vector<4x4x128xf32>
    %276 = arith.mulf %274, %275 : vector<4x4x128xf32>
    %277 = arith.addf %271, %276 : vector<4x4x128xf32>
    %278 = vector.extract_strided_slice %266 {offsets = [0, 2, 0], sizes = [4, 1, 128], strides = [1, 1, 1]} : vector<4x4x128xf32> to vector<4x1x128xf32>
    %279 = vector.extract_strided_slice %266 {offsets = [2, 0, 0], sizes = [1, 4, 128], strides = [1, 1, 1]} : vector<4x4x128xf32> to vector<1x4x128xf32>
    %280 = vector.broadcast %278 : vector<4x1x128xf32> to vector<4x4x128xf32>
    %281 = vector.broadcast %279 : vector<1x4x128xf32> to vector<4x4x128xf32>
    %282 = arith.mulf %280, %281 : vector<4x4x128xf32>
    %283 = arith.addf %277, %282 : vector<4x4x128xf32>
    %284 = vector.extract_strided_slice %266 {offsets = [0, 3, 0], sizes = [4, 1, 128], strides = [1, 1, 1]} : vector<4x4x128xf32> to vector<4x1x128xf32>
    %285 = vector.extract_strided_slice %266 {offsets = [3, 0, 0], sizes = [1, 4, 128], strides = [1, 1, 1]} : vector<4x4x128xf32> to vector<1x4x128xf32>
    %286 = vector.broadcast %284 : vector<4x1x128xf32> to vector<4x4x128xf32>
    %287 = vector.broadcast %285 : vector<1x4x128xf32> to vector<4x4x128xf32>
    %288 = arith.mulf %286, %287 : vector<4x4x128xf32>
    %289 = arith.addf %283, %288 : vector<4x4x128xf32>
    %290 = vector.extract_strided_slice %289 {offsets = [0, 0, 0], sizes = [4, 1, 128], strides = [1, 1, 1]} : vector<4x4x128xf32> to vector<4x1x128xf32>
    %291 = vector.extract_strided_slice %289 {offsets = [0, 0, 0], sizes = [1, 4, 128], strides = [1, 1, 1]} : vector<4x4x128xf32> to vector<1x4x128xf32>
    %292 = vector.broadcast %290 : vector<4x1x128xf32> to vector<4x4x128xf32>
    %293 = vector.broadcast %291 : vector<1x4x128xf32> to vector<4x4x128xf32>
    %294 = arith.mulf %292, %293 : vector<4x4x128xf32>
    %295 = vector.extract_strided_slice %289 {offsets = [0, 1, 0], sizes = [4, 1, 128], strides = [1, 1, 1]} : vector<4x4x128xf32> to vector<4x1x128xf32>
    %296 = vector.extract_strided_slice %289 {offsets = [1, 0, 0], sizes = [1, 4, 128], strides = [1, 1, 1]} : vector<4x4x128xf32> to vector<1x4x128xf32>
    %297 = vector.broadcast %295 : vector<4x1x128xf32> to vector<4x4x128xf32>
    %298 = vector.broadcast %296 : vector<1x4x128xf32> to vector<4x4x128xf32>
    %299 = arith.mulf %297, %298 : vector<4x4x128xf32>
    %300 = arith.addf %294, %299 : vector<4x4x128xf32>
    %301 = vector.extract_strided_slice %289 {offsets = [0, 2, 0], sizes = [4, 1, 128], strides = [1, 1, 1]} : vector<4x4x128xf32> to vector<4x1x128xf32>
    %302 = vector.extract_strided_slice %289 {offsets = [2, 0, 0], sizes = [1, 4, 128], strides = [1, 1, 1]} : vector<4x4x128xf32> to vector<1x4x128xf32>
    %303 = vector.broadcast %301 : vector<4x1x128xf32> to vector<4x4x128xf32>
    %304 = vector.broadcast %302 : vector<1x4x128xf32> to vector<4x4x128xf32>
    %305 = arith.mulf %303, %304 : vector<4x4x128xf32>
    %306 = arith.addf %300, %305 : vector<4x4x128xf32>
    %307 = vector.extract_strided_slice %289 {offsets = [0, 3, 0], sizes = [4, 1, 128], strides = [1, 1, 1]} : vector<4x4x128xf32> to vector<4x1x128xf32>
    %308 = vector.extract_strided_slice %289 {offsets = [3, 0, 0], sizes = [1, 4, 128], strides = [1, 1, 1]} : vector<4x4x128xf32> to vector<1x4x128xf32>
    %309 = vector.broadcast %307 : vector<4x1x128xf32> to vector<4x4x128xf32>
    %310 = vector.broadcast %308 : vector<1x4x128xf32> to vector<4x4x128xf32>
    %311 = arith.mulf %309, %310 : vector<4x4x128xf32>
    %312 = arith.addf %306, %311 : vector<4x4x128xf32>
    %313 = vector.extract_strided_slice %312 {offsets = [0, 0, 0], sizes = [4, 1, 128], strides = [1, 1, 1]} : vector<4x4x128xf32> to vector<4x1x128xf32>
    %314 = vector.extract_strided_slice %312 {offsets = [0, 0, 0], sizes = [1, 4, 128], strides = [1, 1, 1]} : vector<4x4x128xf32> to vector<1x4x128xf32>
    %315 = vector.broadcast %313 : vector<4x1x128xf32> to vector<4x4x128xf32>
    %316 = vector.broadcast %314 : vector<1x4x128xf32> to vector<4x4x128xf32>
    %317 = arith.mulf %315, %316 : vector<4x4x128xf32>
    %318 = vector.extract_strided_slice %312 {offsets = [0, 1, 0], sizes = [4, 1, 128], strides = [1, 1, 1]} : vector<4x4x128xf32> to vector<4x1x128xf32>
    %319 = vector.extract_strided_slice %312 {offsets = [1, 0, 0], sizes = [1, 4, 128], strides = [1, 1, 1]} : vector<4x4x128xf32> to vector<1x4x128xf32>
    %320 = vector.broadcast %318 : vector<4x1x128xf32> to vector<4x4x128xf32>
    %321 = vector.broadcast %319 : vector<1x4x128xf32> to vector<4x4x128xf32>
    %322 = arith.mulf %320, %321 : vector<4x4x128xf32>
    %323 = arith.addf %317, %322 : vector<4x4x128xf32>
    %324 = vector.extract_strided_slice %312 {offsets = [0, 2, 0], sizes = [4, 1, 128], strides = [1, 1, 1]} : vector<4x4x128xf32> to vector<4x1x128xf32>
    %325 = vector.extract_strided_slice %312 {offsets = [2, 0, 0], sizes = [1, 4, 128], strides = [1, 1, 1]} : vector<4x4x128xf32> to vector<1x4x128xf32>
    %326 = vector.broadcast %324 : vector<4x1x128xf32> to vector<4x4x128xf32>
    %327 = vector.broadcast %325 : vector<1x4x128xf32> to vector<4x4x128xf32>
    %328 = arith.mulf %326, %327 : vector<4x4x128xf32>
    %329 = arith.addf %323, %328 : vector<4x4x128xf32>
    %330 = vector.extract_strided_slice %312 {offsets = [0, 3, 0], sizes = [4, 1, 128], strides = [1, 1, 1]} : vector<4x4x128xf32> to vector<4x1x128xf32>
    %331 = vector.extract_strided_slice %312 {offsets = [3, 0, 0], sizes = [1, 4, 128], strides = [1, 1, 1]} : vector<4x4x128xf32> to vector<1x4x128xf32>
    %332 = vector.broadcast %330 : vector<4x1x128xf32> to vector<4x4x128xf32>
    %333 = vector.broadcast %331 : vector<1x4x128xf32> to vector<4x4x128xf32>
    %334 = arith.mulf %332, %333 : vector<4x4x128xf32>
    %335 = arith.addf %329, %334 : vector<4x4x128xf32>
    %336 = vector.extract_strided_slice %335 {offsets = [0, 0, 0], sizes = [4, 1, 128], strides = [1, 1, 1]} : vector<4x4x128xf32> to vector<4x1x128xf32>
    %337 = vector.extract_strided_slice %335 {offsets = [0, 0, 0], sizes = [1, 4, 128], strides = [1, 1, 1]} : vector<4x4x128xf32> to vector<1x4x128xf32>
    %338 = vector.broadcast %336 : vector<4x1x128xf32> to vector<4x4x128xf32>
    %339 = vector.broadcast %337 : vector<1x4x128xf32> to vector<4x4x128xf32>
    %340 = arith.mulf %338, %339 : vector<4x4x128xf32>
    %341 = vector.extract_strided_slice %335 {offsets = [0, 1, 0], sizes = [4, 1, 128], strides = [1, 1, 1]} : vector<4x4x128xf32> to vector<4x1x128xf32>
    %342 = vector.extract_strided_slice %335 {offsets = [1, 0, 0], sizes = [1, 4, 128], strides = [1, 1, 1]} : vector<4x4x128xf32> to vector<1x4x128xf32>
    %343 = vector.broadcast %341 : vector<4x1x128xf32> to vector<4x4x128xf32>
    %344 = vector.broadcast %342 : vector<1x4x128xf32> to vector<4x4x128xf32>
    %345 = arith.mulf %343, %344 : vector<4x4x128xf32>
    %346 = arith.addf %340, %345 : vector<4x4x128xf32>
    %347 = vector.extract_strided_slice %335 {offsets = [0, 2, 0], sizes = [4, 1, 128], strides = [1, 1, 1]} : vector<4x4x128xf32> to vector<4x1x128xf32>
    %348 = vector.extract_strided_slice %335 {offsets = [2, 0, 0], sizes = [1, 4, 128], strides = [1, 1, 1]} : vector<4x4x128xf32> to vector<1x4x128xf32>
    %349 = vector.broadcast %347 : vector<4x1x128xf32> to vector<4x4x128xf32>
    %350 = vector.broadcast %348 : vector<1x4x128xf32> to vector<4x4x128xf32>
    %351 = arith.mulf %349, %350 : vector<4x4x128xf32>
    %352 = arith.addf %346, %351 : vector<4x4x128xf32>
    %353 = vector.extract_strided_slice %335 {offsets = [0, 3, 0], sizes = [4, 1, 128], strides = [1, 1, 1]} : vector<4x4x128xf32> to vector<4x1x128xf32>
    %354 = vector.extract_strided_slice %335 {offsets = [3, 0, 0], sizes = [1, 4, 128], strides = [1, 1, 1]} : vector<4x4x128xf32> to vector<1x4x128xf32>
    %355 = vector.broadcast %353 : vector<4x1x128xf32> to vector<4x4x128xf32>
    %356 = vector.broadcast %354 : vector<1x4x128xf32> to vector<4x4x128xf32>
    %357 = arith.mulf %355, %356 : vector<4x4x128xf32>
    %358 = arith.addf %352, %357 : vector<4x4x128xf32>
    %359 = vector.extract_strided_slice %358 {offsets = [0, 0, 0], sizes = [4, 1, 128], strides = [1, 1, 1]} : vector<4x4x128xf32> to vector<4x1x128xf32>
    %360 = vector.extract_strided_slice %358 {offsets = [0, 0, 0], sizes = [1, 4, 128], strides = [1, 1, 1]} : vector<4x4x128xf32> to vector<1x4x128xf32>
    %361 = vector.broadcast %359 : vector<4x1x128xf32> to vector<4x4x128xf32>
    %362 = vector.broadcast %360 : vector<1x4x128xf32> to vector<4x4x128xf32>
    %363 = arith.mulf %361, %362 : vector<4x4x128xf32>
    %364 = vector.extract_strided_slice %358 {offsets = [0, 1, 0], sizes = [4, 1, 128], strides = [1, 1, 1]} : vector<4x4x128xf32> to vector<4x1x128xf32>
    %365 = vector.extract_strided_slice %358 {offsets = [1, 0, 0], sizes = [1, 4, 128], strides = [1, 1, 1]} : vector<4x4x128xf32> to vector<1x4x128xf32>
    %366 = vector.broadcast %364 : vector<4x1x128xf32> to vector<4x4x128xf32>
    %367 = vector.broadcast %365 : vector<1x4x128xf32> to vector<4x4x128xf32>
    %368 = arith.mulf %366, %367 : vector<4x4x128xf32>
    %369 = arith.addf %363, %368 : vector<4x4x128xf32>
    %370 = vector.extract_strided_slice %358 {offsets = [0, 2, 0], sizes = [4, 1, 128], strides = [1, 1, 1]} : vector<4x4x128xf32> to vector<4x1x128xf32>
    %371 = vector.extract_strided_slice %358 {offsets = [2, 0, 0], sizes = [1, 4, 128], strides = [1, 1, 1]} : vector<4x4x128xf32> to vector<1x4x128xf32>
    %372 = vector.broadcast %370 : vector<4x1x128xf32> to vector<4x4x128xf32>
    %373 = vector.broadcast %371 : vector<1x4x128xf32> to vector<4x4x128xf32>
    %374 = arith.mulf %372, %373 : vector<4x4x128xf32>
    %375 = arith.addf %369, %374 : vector<4x4x128xf32>
    %376 = vector.extract_strided_slice %358 {offsets = [0, 3, 0], sizes = [4, 1, 128], strides = [1, 1, 1]} : vector<4x4x128xf32> to vector<4x1x128xf32>
    %377 = vector.extract_strided_slice %358 {offsets = [3, 0, 0], sizes = [1, 4, 128], strides = [1, 1, 1]} : vector<4x4x128xf32> to vector<1x4x128xf32>
    %378 = vector.broadcast %376 : vector<4x1x128xf32> to vector<4x4x128xf32>
    %379 = vector.broadcast %377 : vector<1x4x128xf32> to vector<4x4x128xf32>
    %380 = arith.mulf %378, %379 : vector<4x4x128xf32>
    %381 = arith.addf %375, %380 : vector<4x4x128xf32>
    %382 = vector.extract_strided_slice %381 {offsets = [0, 0, 0], sizes = [4, 1, 128], strides = [1, 1, 1]} : vector<4x4x128xf32> to vector<4x1x128xf32>
    %383 = vector.extract_strided_slice %381 {offsets = [0, 0, 0], sizes = [1, 4, 128], strides = [1, 1, 1]} : vector<4x4x128xf32> to vector<1x4x128xf32>
    %384 = vector.broadcast %382 : vector<4x1x128xf32> to vector<4x4x128xf32>
    %385 = vector.broadcast %383 : vector<1x4x128xf32> to vector<4x4x128xf32>
    %386 = arith.mulf %384, %385 : vector<4x4x128xf32>
    %387 = vector.extract_strided_slice %381 {offsets = [0, 1, 0], sizes = [4, 1, 128], strides = [1, 1, 1]} : vector<4x4x128xf32> to vector<4x1x128xf32>
    %388 = vector.extract_strided_slice %381 {offsets = [1, 0, 0], sizes = [1, 4, 128], strides = [1, 1, 1]} : vector<4x4x128xf32> to vector<1x4x128xf32>
    %389 = vector.broadcast %387 : vector<4x1x128xf32> to vector<4x4x128xf32>
    %390 = vector.broadcast %388 : vector<1x4x128xf32> to vector<4x4x128xf32>
    %391 = arith.mulf %389, %390 : vector<4x4x128xf32>
    %392 = arith.addf %386, %391 : vector<4x4x128xf32>
    %393 = vector.extract_strided_slice %381 {offsets = [0, 2, 0], sizes = [4, 1, 128], strides = [1, 1, 1]} : vector<4x4x128xf32> to vector<4x1x128xf32>
    %394 = vector.extract_strided_slice %381 {offsets = [2, 0, 0], sizes = [1, 4, 128], strides = [1, 1, 1]} : vector<4x4x128xf32> to vector<1x4x128xf32>
    %395 = vector.broadcast %393 : vector<4x1x128xf32> to vector<4x4x128xf32>
    %396 = vector.broadcast %394 : vector<1x4x128xf32> to vector<4x4x128xf32>
    %397 = arith.mulf %395, %396 : vector<4x4x128xf32>
    %398 = arith.addf %392, %397 : vector<4x4x128xf32>
    %399 = vector.extract_strided_slice %381 {offsets = [0, 3, 0], sizes = [4, 1, 128], strides = [1, 1, 1]} : vector<4x4x128xf32> to vector<4x1x128xf32>
    %400 = vector.extract_strided_slice %381 {offsets = [3, 0, 0], sizes = [1, 4, 128], strides = [1, 1, 1]} : vector<4x4x128xf32> to vector<1x4x128xf32>
    %401 = vector.broadcast %399 : vector<4x1x128xf32> to vector<4x4x128xf32>
    %402 = vector.broadcast %400 : vector<1x4x128xf32> to vector<4x4x128xf32>
    %403 = arith.mulf %401, %402 : vector<4x4x128xf32>
    %404 = arith.addf %398, %403 : vector<4x4x128xf32>
    %405 = vector.extract_strided_slice %404 {offsets = [0, 0, 0], sizes = [1, 4, 128], strides = [1, 1, 1]} : vector<4x4x128xf32> to vector<1x4x128xf32>
    %406 = vector.shape_cast %405 : vector<1x4x128xf32> to vector<4x128xf32>
    %c0_37 = arith.constant 0 : index
    %c0_38 = arith.constant 0 : index
    %407 = vector.load %arg8[%c0_37, %c0_38] : memref<16x128xf32, #tpu.memory_space<vmem>>, vector<4x128xf32>
    tpu.vector_store %arg8[%c0_37, %c0_38], %406 {strides = array<i32>} : memref<16x128xf32, #tpu.memory_space<vmem>>, vector<4x128xf32>,
    %408 = vector.extract_strided_slice %404 {offsets = [1, 0, 0], sizes = [1, 4, 128], strides = [1, 1, 1]} : vector<4x4x128xf32> to vector<1x4x128xf32>
    %409 = vector.shape_cast %408 : vector<1x4x128xf32> to vector<4x128xf32>
    %c4 = arith.constant 4 : index
    %c0_39 = arith.constant 0 : index
    %410 = vector.load %arg8[%c4, %c0_39] : memref<16x128xf32, #tpu.memory_space<vmem>>, vector<4x128xf32>
    tpu.vector_store %arg8[%c4, %c0_39], %409 {strides = array<i32>} : memref<16x128xf32, #tpu.memory_space<vmem>>, vector<4x128xf32>,
    %411 = vector.extract_strided_slice %404 {offsets = [2, 0, 0], sizes = [1, 4, 128], strides = [1, 1, 1]} : vector<4x4x128xf32> to vector<1x4x128xf32>
    %412 = vector.shape_cast %411 : vector<1x4x128xf32> to vector<4x128xf32>
    %c8 = arith.constant 8 : index
    %c0_40 = arith.constant 0 : index
    %413 = vector.load %arg8[%c8, %c0_40] : memref<16x128xf32, #tpu.memory_space<vmem>>, vector<4x128xf32>
    tpu.vector_store %arg8[%c8, %c0_40], %412 {strides = array<i32>} : memref<16x128xf32, #tpu.memory_space<vmem>>, vector<4x128xf32>,
    %414 = vector.extract_strided_slice %404 {offsets = [3, 0, 0], sizes = [1, 4, 128], strides = [1, 1, 1]} : vector<4x4x128xf32> to vector<1x4x128xf32>
    %415 = vector.shape_cast %414 : vector<1x4x128xf32> to vector<4x128xf32>
    %c12 = arith.constant 12 : index
    %c0_41 = arith.constant 0 : index
    %416 = vector.load %arg8[%c12, %c0_41] : memref<16x128xf32, #tpu.memory_space<vmem>>, vector<4x128xf32>
    tpu.vector_store %arg8[%c12, %c0_41], %415 {strides = array<i32>} : memref<16x128xf32, #tpu.memory_space<vmem>>, vector<4x128xf32>,
    return
  }
  func.func @transform_0(%arg0: i32) -> (i32, i32) {
    %c0_i32 = arith.constant 0 : i32
    %c0_i32_0 = arith.constant 0 : i32
    return %c0_i32, %arg0 : i32, i32
  }
  func.func @transform_1(%arg0: i32) -> (i32, i32) {
    %c0_i32 = arith.constant 0 : i32
    %c0_i32_0 = arith.constant 0 : i32
    %c0_i32_1 = arith.constant 0 : i32
    return %c0_i32, %c0_i32_0 : i32, i32
  }
  func.func @transform_2(%arg0: i32) -> (i32, i32) {
    %c0_i32 = arith.constant 0 : i32
    %c0_i32_0 = arith.constant 0 : i32
    %c0_i32_1 = arith.constant 0 : i32
    return %c0_i32, %c0_i32_0 : i32, i32
  }
  func.func @transform_3(%arg0: i32) -> (i32, i32, i32) {
    %c0_i32 = arith.constant 0 : i32
    %c0_i32_0 = arith.constant 0 : i32
    %c0_i32_1 = arith.constant 0 : i32
    %c0_i32_2 = arith.constant 0 : i32
    return %c0_i32, %c0_i32_0, %c0_i32_1 : i32, i32, i32
  }
  func.func @transform_4(%arg0: i32) -> (i32, i32, i32) {
    %c0_i32 = arith.constant 0 : i32
    %c0_i32_0 = arith.constant 0 : i32
    %c0_i32_1 = arith.constant 0 : i32
    %c0_i32_2 = arith.constant 0 : i32
    return %c0_i32, %c0_i32_0, %c0_i32_1 : i32, i32, i32
  }
  func.func @transform_5(%arg0: i32) -> (i32, i32) {
    %c0_i32 = arith.constant 0 : i32
    %c0_i32_0 = arith.constant 0 : i32
    %c0_i32_1 = arith.constant 0 : i32
    return %c0_i32, %c0_i32_0 : i32, i32
  }
  func.func @transform_6(%arg0: i32) -> (i32, i32) {
    %c0_i32 = arith.constant 0 : i32
    %c0_i32_0 = arith.constant 0 : i32
    %c0_i32_1 = arith.constant 0 : i32
    return %c0_i32, %c0_i32_0 : i32, i32
  }
  func.func @transform_7(%arg0: i32) -> (i32, i32) {
    %c0_i32 = arith.constant 0 : i32
    %c0_i32_0 = arith.constant 0 : i32
    return %c0_i32, %arg0 : i32, i32
  }
}

</mosaic_0001>

<llo_original>
// kernel: tpu_custom_call.1
$region0: #{tpu_custom_call.1}
  #allocation0 [shape = 'u32[]', space=smem, size = 0x4, offset = 0x4, fixed_abs, tag = 'smem constant byte address 0x4 - core index']
  #allocation1 [shape = 'u32[72,128]{1,0:T(1,128)}', space=vmem, size = 0x9000, scoped, tag = 'internal scratch']
  %s0 = inlined_call_operand.vmem [shape: f32[1,256], index: 0, kind: input, shape index: {}]
  %s1 = inlined_call_operand.vmem [shape: f32[32,1], index: 1, kind: input, shape index: {}]
  %s2 = inlined_call_operand.vmem [shape: f32[32,1], index: 2, kind: input, shape index: {}]
  %s3 = inlined_call_operand.vmem [shape: f32[1,32,32], index: 3, kind: input, shape index: {}]
  %s4 = inlined_call_operand.vmem [shape: f32[1,32,1], index: 4, kind: input, shape index: {}]
  %s5 = inlined_call_operand.vmem [shape: f32[6,32], index: 5, kind: input, shape index: {}]
  %s6 = inlined_call_operand.vmem [shape: f32[6,1], index: 6, kind: input, shape index: {}]
  %s7 = inlined_call_operand.hbm [shape: f32[16,256], index: 7, kind: output, shape index: {}]
  %s8 = sld [smem:[#allocation0]]
  $region61: #{tpu_custom_call.1} parent=0
    _
  %s10 = ssub.s32 1, %s8
  %s11 = scalar_select 0, %s10, %s8
  $region1: #{tpu_custom_call.1} parent=0
    #allocation2 [shape = 'u8[16384]{0}', space=vmem, size = 0x4000, scoped, tag = 'output window, operand 0']
    #allocation3 [shape = 's32[2]{0}', space=sflag, size = 0x8, scoped, tag = 'scoped memory for tpu_custom_call.1']
    %12 = vsyncpa [#allocation3], 0
    %s13 = scalar_lea.sflag [#allocation3], 1
    %14 = vsyncpa %s13, 0
    loop: start=0, step=1, limit=4
    $region2: #{tpu_custom_call.1} parent=1 // loop_pre_header
      _
    $region3: #{tpu_custom_call.1} parent=1 // loop_header
      %s16 = sphi 0, %s20
      %p17 = scmp.ge.s32.totalorder %s16, 4
      %s26 = sphi 0, %s28
      %s29 = sphi 0, %s26
      %s30 = sphi 0, %s29
      %s46 = sphi 0, %s30
      %s50 = sphi 0, %s50
      %s52 = sphi 0, %s50
      %s53 = sphi 0, %s52
      %s67 = sphi 0, %s53
      %s71 = sphi 0, %s71
      %s73 = sphi 0, %s71
      %s74 = sphi 0, %s73
      %s88 = sphi 0, %s74
      %s92 = sphi 0, %s92
      %s94 = sphi 0, %s92
      %s95 = sphi 0, %s94
      %s109 = sphi 0, %s95
      %s113 = sphi 0, %s113
      %s115 = sphi 0, %s113
      %s116 = sphi 0, %s115
      %s130 = sphi 0, %s116
      %s134 = sphi 0, %s134
      %s136 = sphi 0, %s134
      %s137 = sphi 0, %s136
      %s151 = sphi 0, %s137
      %s155 = sphi 0, %s155
      %s157 = sphi 0, %s155
      %s158 = sphi 0, %s157
      %s172 = sphi 0, %s158
      %s178 = sphi 0, %s180
      %s181 = sphi 0, %s178
      %s182 = sphi 0, %s181
      %s198 = sphi 0, %s182
    $region4: #{tpu_custom_call.1} parent=1 // loop_header_branch
      %19 = sbr.rel (%p17) target = $region8
    $region5: #{tpu_custom_call.1} parent=1 // loop_body
      %s21 = ssub.s32 %s16, 1
      %s22 = ssub.s32 %s16, 2
      %s23 = sadd.s32 %s16, 1
      %s24 = ssub.s32 %s16, %s23
      %p25 = scmp.eq.s32.totalorder %s24, 0
      %s27 = sadd.s32 %s26, 1
      %s28 = scalar_select %p25, %s26, %s27
      %p31 = pneg %p25
      %p32 = scmp.eq.s32.totalorder %s16, 1
      %p33 = por %p31, %p32
      %p34 = scmp.ne.s32.totalorder %s26, %s29
      %p35 = scmp.eq.s32.totalorder %s16, 0
      %p36 = por %p34, %p35
      %p37 = scmp.ne.s32.totalorder %s26, %s29
      %p38 = scmp.eq.s32.totalorder %s21, 1
      %p39 = por %p37, %p38
      %p40 = scmp.ne.s32.totalorder %s29, %s30
      %p41 = scmp.eq.s32.totalorder %s21, 0
      %p42 = por %p40, %p41
      %p43 = scmp.ne.s32.totalorder %s29, %s30
      %p44 = scmp.eq.s32.totalorder %s22, 1
      %p45 = por %p43, %p44
      %p47 = scmp.ne.s32.totalorder %s30, %s46
      %p48 = scmp.eq.s32.totalorder %s22, 0
      %p49 = por %p47, %p48
      %s51 = sadd.s32 %s50, 1
      %p54 = scmp.eq.s32.totalorder %s16, 1
      %p55 = scmp.ne.s32.totalorder %s50, %s52
      %p56 = scmp.eq.s32.totalorder %s16, 0
      %p57 = por %p55, %p56
      %p58 = scmp.ne.s32.totalorder %s50, %s52
      %p59 = scmp.eq.s32.totalorder %s21, 1
      %p60 = por %p58, %p59
      %p61 = scmp.ne.s32.totalorder %s52, %s53
      %p62 = scmp.eq.s32.totalorder %s21, 0
      %p63 = por %p61, %p62
      %p64 = scmp.ne.s32.totalorder %s52, %s53
      %p65 = scmp.eq.s32.totalorder %s22, 1
      %p66 = por %p64, %p65
      %p68 = scmp.ne.s32.totalorder %s53, %s67
      %p69 = scmp.eq.s32.totalorder %s22, 0
      %p70 = por %p68, %p69
      %s72 = sadd.s32 %s71, 1
      %p75 = scmp.eq.s32.totalorder %s16, 1
      %p76 = scmp.ne.s32.totalorder %s71, %s73
      %p77 = scmp.eq.s32.totalorder %s16, 0
      %p78 = por %p76, %p77
      %p79 = scmp.ne.s32.totalorder %s71, %s73
      %p80 = scmp.eq.s32.totalorder %s21, 1
      %p81 = por %p79, %p80
      %p82 = scmp.ne.s32.totalorder %s73, %s74
      %p83 = scmp.eq.s32.totalorder %s21, 0
      %p84 = por %p82, %p83
      %p85 = scmp.ne.s32.totalorder %s73, %s74
      %p86 = scmp.eq.s32.totalorder %s22, 1
      %p87 = por %p85, %p86
      %p89 = scmp.ne.s32.totalorder %s74, %s88
      %p90 = scmp.eq.s32.totalorder %s22, 0
      %p91 = por %p89, %p90
      %s93 = sadd.s32 %s92, 1
      %p96 = scmp.eq.s32.totalorder %s16, 1
      %p97 = scmp.ne.s32.totalorder %s92, %s94
      %p98 = scmp.eq.s32.totalorder %s16, 0
      %p99 = por %p97, %p98
      %p100 = scmp.ne.s32.totalorder %s92, %s94
      %p101 = scmp.eq.s32.totalorder %s21, 1
      %p102 = por %p100, %p101
      %p103 = scmp.ne.s32.totalorder %s94, %s95
      %p104 = scmp.eq.s32.totalorder %s21, 0
      %p105 = por %p103, %p104
      %p106 = scmp.ne.s32.totalorder %s94, %s95
      %p107 = scmp.eq.s32.totalorder %s22, 1
      %p108 = por %p106, %p107
      %p110 = scmp.ne.s32.totalorder %s95, %s109
      %p111 = scmp.eq.s32.totalorder %s22, 0
      %p112 = por %p110, %p111
      %s114 = sadd.s32 %s113, 1
      %p117 = scmp.eq.s32.totalorder %s16, 1
      %p118 = scmp.ne.s32.totalorder %s113, %s115
      %p119 = scmp.eq.s32.totalorder %s16, 0
      %p120 = por %p118, %p119
      %p121 = scmp.ne.s32.totalorder %s113, %s115
      %p122 = scmp.eq.s32.totalorder %s21, 1
      %p123 = por %p121, %p122
      %p124 = scmp.ne.s32.totalorder %s115, %s116
      %p125 = scmp.eq.s32.totalorder %s21, 0
      %p126 = por %p124, %p125
      %p127 = scmp.ne.s32.totalorder %s115, %s116
      %p128 = scmp.eq.s32.totalorder %s22, 1
      %p129 = por %p127, %p128
      %p131 = scmp.ne.s32.totalorder %s116, %s130
      %p132 = scmp.eq.s32.totalorder %s22, 0
      %p133 = por %p131, %p132
      %s135 = sadd.s32 %s134, 1
      %p138 = scmp.eq.s32.totalorder %s16, 1
      %p139 = scmp.ne.s32.totalorder %s134, %s136
      %p140 = scmp.eq.s32.totalorder %s16, 0
      %p141 = por %p139, %p140
      %p142 = scmp.ne.s32.totalorder %s134, %s136
      %p143 = scmp.eq.s32.totalorder %s21, 1
      %p144 = por %p142, %p143
      %p145 = scmp.ne.s32.totalorder %s136, %s137
      %p146 = scmp.eq.s32.totalorder %s21, 0
      %p147 = por %p145, %p146
      %p148 = scmp.ne.s32.totalorder %s136, %s137
      %p149 = scmp.eq.s32.totalorder %s22, 1
      %p150 = por %p148, %p149
      %p152 = scmp.ne.s32.totalorder %s137, %s151
      %p153 = scmp.eq.s32.totalorder %s22, 0
      %p154 = por %p152, %p153
      %s156 = sadd.s32 %s155, 1
      %p159 = scmp.eq.s32.totalorder %s16, 1
      %p160 = scmp.ne.s32.totalorder %s155, %s157
      %p161 = scmp.eq.s32.totalorder %s16, 0
      %p162 = por %p160, %p161
      %p163 = scmp.ne.s32.totalorder %s155, %s157
      %p164 = scmp.eq.s32.totalorder %s21, 1
      %p165 = por %p163, %p164
      %p166 = scmp.ne.s32.totalorder %s157, %s158
      %p167 = scmp.eq.s32.totalorder %s21, 0
      %p168 = por %p166, %p167
      %p169 = scmp.ne.s32.totalorder %s157, %s158
      %p170 = scmp.eq.s32.totalorder %s22, 1
      %p171 = por %p169, %p170
      %p173 = scmp.ne.s32.totalorder %s158, %s172
      %p174 = scmp.eq.s32.totalorder %s22, 0
      %p175 = por %p173, %p174
      %s176 = ssub.s32 %s16, %s23
      %p177 = scmp.eq.s32.totalorder %s176, 0
      %s179 = sadd.s32 %s178, 1
      %s180 = scalar_select %p177, %s178, %s179
      %p183 = pneg %p177
      %p184 = scmp.eq.s32.totalorder %s16, 1
      %p185 = por %p183, %p184
      %p186 = scmp.ne.s32.totalorder %s178, %s181
      %p187 = scmp.eq.s32.totalorder %s16, 0
      %p188 = por %p186, %p187
      %p189 = scmp.ne.s32.totalorder %s178, %s181
      %p190 = scmp.eq.s32.totalorder %s21, 1
      %p191 = por %p189, %p190
      %p192 = scmp.ne.s32.totalorder %s181, %s182
      %p193 = scmp.eq.s32.totalorder %s21, 0
      %p194 = por %p192, %p193
      %p195 = scmp.ne.s32.totalorder %s181, %s182
      %p196 = scmp.eq.s32.totalorder %s22, 1
      %p197 = por %p195, %p196
      %p199 = scmp.ne.s32.totalorder %s182, %s198
      %p200 = scmp.eq.s32.totalorder %s22, 0
      %p201 = por %p199, %p200
      %p202 = scmp.le.s32.totalorder 1, %s16
      %p203 = scmp.lt.s32.totalorder %s16, 3
      %p204 = pnand %p202, %p203
      %p205 = pneg %p204
      // Predicated region
      $region9: #{tpu_custom_call.1} parent=5 // pred_check
        _
      $region10: #{tpu_custom_call.1} parent=5 // pred_check_branch
        %207 = sbr.rel (%p204) target = $region12
      $region11: #{tpu_custom_call.1} parent=5 // pred_region
        %s208 = ssub.s32 %s16, 1
        // Predicated region
        $region13: #{tpu_custom_call.1} parent=11 // pred_check
          %p209 = pneg %p63
        $region14: #{tpu_custom_call.1} parent=11 // pred_check_branch
          %211 = sbr.rel (%p209) target = $region16
        $region15: #{tpu_custom_call.1} parent=11 // pred_region
          _
        $region16: #{tpu_custom_call.1} parent=11 // pred_fallthru
          _
        // Predicated region
        $region17: #{tpu_custom_call.1} parent=11 // pred_check
          %p212 = pneg %p84
        $region18: #{tpu_custom_call.1} parent=11 // pred_check_branch
          %214 = sbr.rel (%p212) target = $region20
        $region19: #{tpu_custom_call.1} parent=11 // pred_region
          _
        $region20: #{tpu_custom_call.1} parent=11 // pred_fallthru
          _
        // Predicated region
        $region21: #{tpu_custom_call.1} parent=11 // pred_check
          %p215 = pneg %p105
        $region22: #{tpu_custom_call.1} parent=11 // pred_check_branch
          %217 = sbr.rel (%p215) target = $region24
        $region23: #{tpu_custom_call.1} parent=11 // pred_region
          _
        $region24: #{tpu_custom_call.1} parent=11 // pred_fallthru
          _
        // Predicated region
        $region25: #{tpu_custom_call.1} parent=11 // pred_check
          %p218 = pneg %p126
        $region26: #{tpu_custom_call.1} parent=11 // pred_check_branch
          %220 = sbr.rel (%p218) target = $region28
        $region27: #{tpu_custom_call.1} parent=11 // pred_region
          _
        $region28: #{tpu_custom_call.1} parent=11 // pred_fallthru
          _
        // Predicated region
        $region29: #{tpu_custom_call.1} parent=11 // pred_check
          %p221 = pneg %p147
        $region30: #{tpu_custom_call.1} parent=11 // pred_check_branch
          %223 = sbr.rel (%p221) target = $region32
        $region31: #{tpu_custom_call.1} parent=11 // pred_region
          _
        $region32: #{tpu_custom_call.1} parent=11 // pred_fallthru
          _
        // Predicated region
        $region33: #{tpu_custom_call.1} parent=11 // pred_check
          %p224 = pneg %p168
        $region34: #{tpu_custom_call.1} parent=11 // pred_check_branch
          %226 = sbr.rel (%p224) target = $region36
        $region35: #{tpu_custom_call.1} parent=11 // pred_region
          _
        $region36: #{tpu_custom_call.1} parent=11 // pred_fallthru
          _
      $region12: #{tpu_custom_call.1} parent=5 // pred_fallthru
        _
      %p227 = scmp.lt.s32.totalorder %s16, 2
      // Predicated region
      $region37: #{tpu_custom_call.1} parent=5 // pred_check
        %p228 = pneg %p227
      $region38: #{tpu_custom_call.1} parent=5 // pred_check_branch
        %230 = sbr.rel (%p228) target = $region40
      $region39: #{tpu_custom_call.1} parent=5 // pred_region
        // Predicated region
        $region41: #{tpu_custom_call.1} parent=39 // pred_check
          %p231 = pneg %p36
        $region42: #{tpu_custom_call.1} parent=39 // pred_check_branch
          %233 = sbr.rel (%p231) target = $region44
        $region43: #{tpu_custom_call.1} parent=39 // pred_region
          %p234 = scmp.lt.s32.totalorder %s16, 1
          %s235 = scalar_select %p234, %s16, 1
          %s236 = scalar_lea.vmem %s0, %s235
        $region44: #{tpu_custom_call.1} parent=39 // pred_fallthru
          _
      $region40: #{tpu_custom_call.1} parent=5 // pred_fallthru
        _
      %p237 = scmp.le.s32.totalorder 1, %s16
      %p238 = scmp.lt.s32.totalorder %s16, 3
      %p239 = pnand %p237, %p238
      %p240 = pneg %p239
      // Predicated region
      $region45: #{tpu_custom_call.1} parent=5 // pred_check
        _
      $region46: #{tpu_custom_call.1} parent=5 // pred_check_branch
        %242 = sbr.rel (%p239) target = $region48
      $region47: #{tpu_custom_call.1} parent=5 // pred_region
        %s243 = ssub.s32 %s16, 1
        %p244 = scmp.lt.s32.totalorder %s21, 1
        %s245 = scalar_select %p244, %s21, 1
        %s246 = scalar_lea.vmem %s0, %s245
        %p247 = pneg %p42
        %p248 = pneg %p39
        %p249 = pneg %p63
        %p250 = pneg %p60
        %p251 = pneg %p84
        %p252 = pneg %p81
        %p253 = pneg %p105
        %p254 = pneg %p102
        %p255 = pneg %p126
        %p256 = pneg %p123
        %p257 = pneg %p147
        %p258 = pneg %p144
        %p259 = pneg %p168
        %p260 = pneg %p165
        %p261 = pneg %p194
        %p262 = pneg %p191
        %s263 = sand.u32 %s181, 1
        %s264 = scalar_lea.sflag [#allocation3], %s263
        %s265 = sand.u32 %s181, 1
        %s266 = smul.addr %s265, 16
        %s267 = scalar_lea.vmem [#allocation2], %s266
        %p268 = scmp.lt.s32.totalorder %s21, 1
        %s269 = scalar_select %p268, %s21, 1
        %s270 = scalar_lea.vmem %s0, %s269
        %v271 = vld [vmem:[%s270] sm:$0x1]
        %v272 = vmul.f32 %v271, 0.2
        %v273 = vsub.f32 %v272, 1.0
        %v274 = vmul.f32 %v273, 1.7320508
        %v275 = vld [vmem:[%s1] sm:$0xff]
        %v276 = vld [vmem:[%s1 + $0x8] sm:$0xff]
        %v277 = vld [vmem:[%s1 + $0x10] sm:$0xff]
        %v278 = vld [vmem:[%s1 + $0x18] sm:$0xff]
        %280 = vset.pattern.permute.xlu0 0
        %281 = vperm.xlu0 %280, %v275
        %v282 = vpop.permute.xlu0 %281
        %285 = vset.pattern.permute.xlu0 0
        %286 = vperm.xlu0 %285, %v276
        %v287 = vpop.permute.xlu0 %286
        %290 = vset.pattern.permute.xlu0 0
        %291 = vperm.xlu0 %290, %v277
        %v292 = vpop.permute.xlu0 %291
        %295 = vset.pattern.permute.xlu0 0
        %296 = vperm.xlu0 %295, %v278
        %v297 = vpop.permute.xlu0 %296
        %v300 = vperm.slane %v274, 0
        %v302 = vmul.f32 %v282, %v300
        %v303 = vmul.f32 %v287, %v300
        %v304 = vmul.f32 %v292, %v300
        %v305 = vmul.f32 %v297, %v300
        %v306 = vld [vmem:[%s2] sm:$0xff]
        %v307 = vld [vmem:[%s2 + $0x8] sm:$0xff]
        %v308 = vld [vmem:[%s2 + $0x10] sm:$0xff]
        %v309 = vld [vmem:[%s2 + $0x18] sm:$0xff]
        %311 = vset.pattern.permute.xlu0 0
        %312 = vperm.xlu0 %311, %v306
        %v313 = vpop.permute.xlu0 %312
        %316 = vset.pattern.permute.xlu0 0
        %317 = vperm.xlu0 %316, %v307
        %v318 = vpop.permute.xlu0 %317
        %321 = vset.pattern.permute.xlu0 0
        %322 = vperm.xlu0 %321, %v308
        %v323 = vpop.permute.xlu0 %322
        %326 = vset.pattern.permute.xlu0 0
        %327 = vperm.xlu0 %326, %v309
        %v328 = vpop.permute.xlu0 %327
        %v330 = vadd.f32 %v302, %v313
        %v331 = vadd.f32 %v303, %v318
        %v332 = vadd.f32 %v304, %v323
        %v333 = vadd.f32 %v305, %v328
        %v334 = vxor.u32 %v330, 2147483648
        %v335 = vxor.u32 %v331, 2147483648
        %v336 = vxor.u32 %v332, 2147483648
        %v337 = vxor.u32 %v333, 2147483648
        %v338 = vmul.f32 %v334, 1.442695
        %v339 = vpow.pop %v338
        %v340 = vmul.f32 %v335, 1.442695
        %v341 = vpow.pop %v340
        %v342 = vmul.f32 %v336, 1.442695
        %v343 = vpow.pop %v342
        %v344 = vmul.f32 %v337, 1.442695
        %v345 = vpow.pop %v344
        %v346 = vadd.f32 %v339, 1.0
        %v347 = vadd.f32 %v341, 1.0
        %v348 = vadd.f32 %v343, 1.0
        %v349 = vadd.f32 %v345, 1.0
        %v350 = vrcp.pop %v346
        %v351 = vmul.f32 %v346, %v350
        %v352 = vsub.f32 1.0, %v351
        %v353 = vmul.f32 %v350, %v352
        %v354 = vadd.f32 %v350, %v353
        %vm355 = vweird.f32 %v346
        %vm356 = vweird.f32 %v350
        %vm357 = vmor %vm355, %vm356
        %v358 = vsel %vm357, %v350, %v354
        %v359 = vand.u32 2147483647, %v346
        %vm360 = vcmp.eq.f32.partialorder %v359, 8.507059e+37
        %v361 = vand.u32 %v346, 2147483648
        %v362 = vor.u32 1.1754944e-38, %v361
        %v363 = vsel %vm360, %v362, %v358
        %v364 = vmul.f32 1.0, %v363
        %v365 = vrcp.pop %v347
        %v366 = vmul.f32 %v347, %v365
        %v367 = vsub.f32 1.0, %v366
        %v368 = vmul.f32 %v365, %v367
        %v369 = vadd.f32 %v365, %v368
        %vm370 = vweird.f32 %v347
        %vm371 = vweird.f32 %v365
        %vm372 = vmor %vm370, %vm371
        %v373 = vsel %vm372, %v365, %v369
        %v374 = vand.u32 2147483647, %v347
        %vm375 = vcmp.eq.f32.partialorder %v374, 8.507059e+37
        %v376 = vand.u32 %v347, 2147483648
        %v377 = vor.u32 1.1754944e-38, %v376
        %v378 = vsel %vm375, %v377, %v373
        %v379 = vmul.f32 1.0, %v378
        %v380 = vrcp.pop %v348
        %v381 = vmul.f32 %v348, %v380
        %v382 = vsub.f32 1.0, %v381
        %v383 = vmul.f32 %v380, %v382
        %v384 = vadd.f32 %v380, %v383
        %vm385 = vweird.f32 %v348
        %vm386 = vweird.f32 %v380
        %vm387 = vmor %vm385, %vm386
        %v388 = vsel %vm387, %v380, %v384
        %v389 = vand.u32 2147483647, %v348
        %vm390 = vcmp.eq.f32.partialorder %v389, 8.507059e+37
        %v391 = vand.u32 %v348, 2147483648
        %v392 = vor.u32 1.1754944e-38, %v391
        %v393 = vsel %vm390, %v392, %v388
        %v394 = vmul.f32 1.0, %v393
        %v395 = vrcp.pop %v349
        %v396 = vmul.f32 %v349, %v395
        %v397 = vsub.f32 1.0, %v396
        %v398 = vmul.f32 %v395, %v397
        %v399 = vadd.f32 %v395, %v398
        %vm400 = vweird.f32 %v349
        %vm401 = vweird.f32 %v395
        %vm402 = vmor %vm400, %vm401
        %v403 = vsel %vm402, %v395, %v399
        %v404 = vand.u32 2147483647, %v349
        %vm405 = vcmp.eq.f32.partialorder %v404, 8.507059e+37
        %v406 = vand.u32 %v349, 2147483648
        %v407 = vor.u32 1.1754944e-38, %v406
        %v408 = vsel %vm405, %v407, %v403
        %v409 = vmul.f32 1.0, %v408
        %v410 = vmul.f32 %v330, %v364
        %v411 = vmul.f32 %v331, %v379
        %v412 = vmul.f32 %v332, %v394
        %v413 = vmul.f32 %v333, %v409
        %v414 = vld [vmem:[%s3] sm:$0xff]
        %v415 = vld [vmem:[%s3 + $0x8] sm:$0xff]
        %v416 = vld [vmem:[%s3 + $0x10] sm:$0xff]
        %v417 = vld [vmem:[%s3 + $0x18] sm:$0xff]
        %v418 = vld [vmem:[%s4] sm:$0xff]
        %v419 = vld [vmem:[%s4 + $0x8] sm:$0xff]
        %v420 = vld [vmem:[%s4 + $0x10] sm:$0xff]
        %v421 = vld [vmem:[%s4 + $0x18] sm:$0xff]
        %423 = vset.pattern.permute.xlu0 0
        %424 = vperm.xlu0 %423, %v418
        %v425 = vpop.permute.xlu0 %424
        %428 = vset.pattern.permute.xlu0 0
        %429 = vperm.xlu0 %428, %v419
        %v430 = vpop.permute.xlu0 %429
        %433 = vset.pattern.permute.xlu0 0
        %434 = vperm.xlu0 %433, %v420
        %v435 = vpop.permute.xlu0 %434
        %438 = vset.pattern.permute.xlu0 0
        %439 = vperm.xlu0 %438, %v421
        %v440 = vpop.permute.xlu0 %439
        %vm442 = vcmask 261120
        %v444 = vsel %vm442, %v414, 0
        %v447 = vsel %vm442, %v415, 0
        %v450 = vsel %vm442, %v416, 0
        %v453 = vsel %vm442, %v417, 0
        %455 = vmatpush.msra.mxu0 0.0
        %456 = vmatpush.msra.mxu0 0.0
        %457 = vmatpush.msra.mxu0 0.0
        %458 = vmatpush.msra.mxu0 0.0
        %459 = vmatpush.msra.mxu0 0.0
        %460 = vmatpush.msra.mxu0 0.0
        %461 = vmatpush.msra.mxu0 0.0
        %462 = vmatpush.msra.mxu0 0.0
        %463 = vmatpush.msra.mxu0 0.0
        %464 = vmatpush.msra.mxu0 0.0
        %465 = vmatpush.msra.mxu0 0.0
        %466 = vmatpush.msra.mxu0 0.0
        %467 = vmatpush.msra.mxu0 %v413
        %468 = vmatpush.msra.mxu0 %v412
        %469 = vmatpush.msra.mxu0 %v411
        %470 = vmatpush.msra.mxu0 %v410
        %471 = vmatmul.f32.gmra.mxu0 %v444
        %v472 = vpop.f32.mrf.mxu0
        %v473 = vadd.f32 %v425, %v472
        %474 = vmatmul.f32.gmra.mxu0 %v447
        %v475 = vpop.f32.mrf.mxu0
        %v476 = vadd.f32 %v430, %v475
        %477 = vmatmul.f32.gmra.mxu0 %v450
        %v478 = vpop.f32.mrf.mxu0
        %v479 = vadd.f32 %v435, %v478
        %480 = vmatmul.f32.gmra.mxu0 %v453
        %v481 = vpop.f32.mrf.mxu0
        %v482 = vadd.f32 %v440, %v481
        %483 = vdwg.mxu0
        %v484 = vxor.u32 %v473, 2147483648
        %v485 = vxor.u32 %v476, 2147483648
        %v486 = vxor.u32 %v479, 2147483648
        %v487 = vxor.u32 %v482, 2147483648
        %v488 = vmul.f32 %v484, 1.442695
        %v489 = vpow.pop %v488
        %v490 = vmul.f32 %v485, 1.442695
        %v491 = vpow.pop %v490
        %v492 = vmul.f32 %v486, 1.442695
        %v493 = vpow.pop %v492
        %v494 = vmul.f32 %v487, 1.442695
        %v495 = vpow.pop %v494
        %v496 = vadd.f32 %v489, 1.0
        %v497 = vadd.f32 %v491, 1.0
        %v498 = vadd.f32 %v493, 1.0
        %v499 = vadd.f32 %v495, 1.0
        %v500 = vrcp.pop %v496
        %v501 = vmul.f32 %v496, %v500
        %v502 = vsub.f32 1.0, %v501
        %v503 = vmul.f32 %v500, %v502
        %v504 = vadd.f32 %v500, %v503
        %vm505 = vweird.f32 %v496
        %vm506 = vweird.f32 %v500
        %vm507 = vmor %vm505, %vm506
        %v508 = vsel %vm507, %v500, %v504
        %v509 = vand.u32 2147483647, %v496
        %vm510 = vcmp.eq.f32.partialorder %v509, 8.507059e+37
        %v511 = vand.u32 %v496, 2147483648
        %v512 = vor.u32 1.1754944e-38, %v511
        %v513 = vsel %vm510, %v512, %v508
        %v514 = vmul.f32 1.0, %v513
        %v515 = vrcp.pop %v497
        %v516 = vmul.f32 %v497, %v515
        %v517 = vsub.f32 1.0, %v516
        %v518 = vmul.f32 %v515, %v517
        %v519 = vadd.f32 %v515, %v518
        %vm520 = vweird.f32 %v497
        %vm521 = vweird.f32 %v515
        %vm522 = vmor %vm520, %vm521
        %v523 = vsel %vm522, %v515, %v519
        %v524 = vand.u32 2147483647, %v497
        %vm525 = vcmp.eq.f32.partialorder %v524, 8.507059e+37
        %v526 = vand.u32 %v497, 2147483648
        %v527 = vor.u32 1.1754944e-38, %v526
        %v528 = vsel %vm525, %v527, %v523
        %v529 = vmul.f32 1.0, %v528
        %v530 = vrcp.pop %v498
        %v531 = vmul.f32 %v498, %v530
        %v532 = vsub.f32 1.0, %v531
        %v533 = vmul.f32 %v530, %v532
        %v534 = vadd.f32 %v530, %v533
        %vm535 = vweird.f32 %v498
        %vm536 = vweird.f32 %v530
        %vm537 = vmor %vm535, %vm536
        %v538 = vsel %vm537, %v530, %v534
        %v539 = vand.u32 2147483647, %v498
        %vm540 = vcmp.eq.f32.partialorder %v539, 8.507059e+37
        %v541 = vand.u32 %v498, 2147483648
        %v542 = vor.u32 1.1754944e-38, %v541
        %v543 = vsel %vm540, %v542, %v538
        %v544 = vmul.f32 1.0, %v543
        %v545 = vrcp.pop %v499
        %v546 = vmul.f32 %v499, %v545
        %v547 = vsub.f32 1.0, %v546
        %v548 = vmul.f32 %v545, %v547
        %v549 = vadd.f32 %v545, %v548
        %vm550 = vweird.f32 %v499
        %vm551 = vweird.f32 %v545
        %vm552 = vmor %vm550, %vm551
        %v553 = vsel %vm552, %v545, %v549
        %v554 = vand.u32 2147483647, %v499
        %vm555 = vcmp.eq.f32.partialorder %v554, 8.507059e+37
        %v556 = vand.u32 %v499, 2147483648
        %v557 = vor.u32 1.1754944e-38, %v556
        %v558 = vsel %vm555, %v557, %v553
        %v559 = vmul.f32 1.0, %v558
        %v560 = vmul.f32 %v473, %v514
        %v561 = vmul.f32 %v476, %v529
        %v562 = vmul.f32 %v479, %v544
        %v563 = vmul.f32 %v482, %v559
        %v564 = vld [vmem:[%s5] sm:$0x3f]
        %v565 = vld [vmem:[%s6] sm:$0x3f]
        %567 = vset.pattern.permute.xlu0 0
        %568 = vperm.xlu0 %567, %v565
        %v569 = vpop.permute.xlu0 %568
        %v572 = vsel %vm442, %v564, 0
        %574 = vmatpush.msra.mxu0 0.0
        %575 = vmatpush.msra.mxu0 0.0
        %576 = vmatpush.msra.mxu0 0.0
        %577 = vmatpush.msra.mxu0 0.0
        %578 = vmatpush.msra.mxu0 0.0
        %579 = vmatpush.msra.mxu0 0.0
        %580 = vmatpush.msra.mxu0 0.0
        %581 = vmatpush.msra.mxu0 0.0
        %582 = vmatpush.msra.mxu0 0.0
        %583 = vmatpush.msra.mxu0 0.0
        %584 = vmatpush.msra.mxu0 0.0
        %585 = vmatpush.msra.mxu0 0.0
        %586 = vmatpush.msra.mxu0 %v563
        %587 = vmatpush.msra.mxu0 %v562
        %588 = vmatpush.msra.mxu0 %v561
        %589 = vmatpush.msra.mxu0 %v560
        %590 = vmatmul.f32.gmra.mxu0 %v572
        %v591 = vpop.f32.mrf.mxu0
        %v592 = vadd.f32 %v569, %v591
        %593 = vdwg.mxu0
        %v595 = vrot.slane %v592, 7
        %vm597 = vcmask 1040384
        %v598 = vsel %vm597, 0.0, %v595
        %vm599 = vcmask 1041408
        %v600 = vsel %vm599, %v598, %v595
        %vm601 = vcmask 1042432
        %v602 = vsel %vm601, %v600, %v595
        %v603 = vsel %vm597, 1.0, 0.0
        %v604 = vsel %vm599, %v603, 0.0
        %v605 = vsel %vm601, %v604, 0.0
        %v606 = vsub.f32 0.0, %v592
        %v607 = vrot.slane %v592, 1
        %v609 = vsel %vm597, %v606, 0.0
        %v610 = vsel %vm599, %v609, %v607
        %v611 = vsel %vm601, %v610, %v607
        %v612 = vsel %vm597, 0.0, 1.0
        %v613 = vsel %vm599, %v612, 0.0
        %v614 = vsel %vm601, %v613, 0.0
        %v616 = vrot.slane %v606, 1
        %v618 = vrot.slane %v606, 2
        %v620 = vrot.slane %v592, 2
        %v622 = vsel %vm597, %v616, %v618
        %v623 = vsel %vm599, %v622, 0.0
        %v624 = vsel %vm601, %v623, %v620
        %v625 = vsel %vm599, 0.0, 1.0
        %v626 = vsel %vm601, %v625, 0.0
        %v627 = vrot.slane %v606, 3
        %v629 = vsel %vm597, %v618, %v627
        %v630 = vsel %vm599, %v629, %v627
        %v631 = vsel %vm601, %v630, 0.0
        %v632 = vsel %vm601, 0.0, 1.0
        %v633 = vmul.f32 %v602, 0.015625
        %v634 = vmul.f32 %v611, 0.015625
        %v635 = vmul.f32 %v624, 0.015625
        %v636 = vmul.f32 %v631, 0.015625
        %v637 = vadd.f32 %v605, %v633
        %v638 = vadd.f32 %v614, %v634
        %v639 = vadd.f32 %v626, %v635
        %v640 = vadd.f32 %v632, %v636
        %v641 = vperm.slane %v633, 0
        %v642 = vperm.slane %v634, 0
        %v643 = vperm.slane %v635, 0
        %v644 = vperm.slane %v636, 0
        %v645 = vmul.f32 %v641, %v633
        %v646 = vmul.f32 %v642, %v633
        %v647 = vmul.f32 %v643, %v633
        %v648 = vmul.f32 %v644, %v633
        %v649 = vperm.slane %v633, 1
        %v650 = vperm.slane %v634, 1
        %v651 = vperm.slane %v635, 1
        %v652 = vperm.slane %v636, 1
        %v653 = vmul.f32 %v649, %v634
        %v654 = vmul.f32 %v650, %v634
        %v655 = vmul.f32 %v651, %v634
        %v656 = vmul.f32 %v652, %v634
        %v657 = vadd.f32 %v645, %v653
        %v658 = vadd.f32 %v646, %v654
        %v659 = vadd.f32 %v647, %v655
        %v660 = vadd.f32 %v648, %v656
        %v661 = vperm.slane %v633, 2
        %v662 = vperm.slane %v634, 2
        %v663 = vperm.slane %v635, 2
        %v664 = vperm.slane %v636, 2
        %v665 = vmul.f32 %v661, %v635
        %v666 = vmul.f32 %v662, %v635
        %v667 = vmul.f32 %v663, %v635
        %v668 = vmul.f32 %v664, %v635
        %v669 = vadd.f32 %v657, %v665
        %v670 = vadd.f32 %v658, %v666
        %v671 = vadd.f32 %v659, %v667
        %v672 = vadd.f32 %v660, %v668
        %v673 = vperm.slane %v633, 3
        %v674 = vperm.slane %v634, 3
        %v675 = vperm.slane %v635, 3
        %v676 = vperm.slane %v636, 3
        %v677 = vmul.f32 %v673, %v636
        %v678 = vmul.f32 %v674, %v636
        %v679 = vmul.f32 %v675, %v636
        %v680 = vmul.f32 %v676, %v636
        %v681 = vadd.f32 %v669, %v677
        %v682 = vadd.f32 %v670, %v678
        %v683 = vadd.f32 %v671, %v679
        %v684 = vadd.f32 %v672, %v680
        %v685 = vmul.f32 %v681, 0.5
        %v686 = vmul.f32 %v682, 0.5
        %v687 = vmul.f32 %v683, 0.5
        %v688 = vmul.f32 %v684, 0.5
        %v689 = vadd.f32 %v637, %v685
        %v690 = vadd.f32 %v638, %v686
        %v691 = vadd.f32 %v639, %v687
        %v692 = vadd.f32 %v640, %v688
        %v693 = vperm.slane %v685, 0
        %v694 = vperm.slane %v686, 0
        %v695 = vperm.slane %v687, 0
        %v696 = vperm.slane %v688, 0
        %v697 = vmul.f32 %v693, %v633
        %v698 = vmul.f32 %v694, %v633
        %v699 = vmul.f32 %v695, %v633
        %v700 = vmul.f32 %v696, %v633
        %v701 = vperm.slane %v685, 1
        %v702 = vperm.slane %v686, 1
        %v703 = vperm.slane %v687, 1
        %v704 = vperm.slane %v688, 1
        %v705 = vmul.f32 %v701, %v634
        %v706 = vmul.f32 %v702, %v634
        %v707 = vmul.f32 %v703, %v634
        %v708 = vmul.f32 %v704, %v634
        %v709 = vadd.f32 %v697, %v705
        %v710 = vadd.f32 %v698, %v706
        %v711 = vadd.f32 %v699, %v707
        %v712 = vadd.f32 %v700, %v708
        %v713 = vperm.slane %v685, 2
        %v714 = vperm.slane %v686, 2
        %v715 = vperm.slane %v687, 2
        %v716 = vperm.slane %v688, 2
        %v717 = vmul.f32 %v713, %v635
        %v718 = vmul.f32 %v714, %v635
        %v719 = vmul.f32 %v715, %v635
        %v720 = vmul.f32 %v716, %v635
        %v721 = vadd.f32 %v709, %v717
        %v722 = vadd.f32 %v710, %v718
        %v723 = vadd.f32 %v711, %v719
        %v724 = vadd.f32 %v712, %v720
        %v725 = vperm.slane %v685, 3
        %v726 = vperm.slane %v686, 3
        %v727 = vperm.slane %v687, 3
        %v728 = vperm.slane %v688, 3
        %v729 = vmul.f32 %v725, %v636
        %v730 = vmul.f32 %v726, %v636
        %v731 = vmul.f32 %v727, %v636
        %v732 = vmul.f32 %v728, %v636
        %v733 = vadd.f32 %v721, %v729
        %v734 = vadd.f32 %v722, %v730
        %v735 = vadd.f32 %v723, %v731
        %v736 = vadd.f32 %v724, %v732
        %v737 = vmul.f32 %v733, 0.33333334
        %v738 = vmul.f32 %v734, 0.33333334
        %v739 = vmul.f32 %v735, 0.33333334
        %v740 = vmul.f32 %v736, 0.33333334
        %v741 = vadd.f32 %v689, %v737
        %v742 = vadd.f32 %v690, %v738
        %v743 = vadd.f32 %v691, %v739
        %v744 = vadd.f32 %v692, %v740
        %v745 = vperm.slane %v737, 0
        %v746 = vperm.slane %v738, 0
        %v747 = vperm.slane %v739, 0
        %v748 = vperm.slane %v740, 0
        %v749 = vmul.f32 %v745, %v633
        %v750 = vmul.f32 %v746, %v633
        %v751 = vmul.f32 %v747, %v633
        %v752 = vmul.f32 %v748, %v633
        %v753 = vperm.slane %v737, 1
        %v754 = vperm.slane %v738, 1
        %v755 = vperm.slane %v739, 1
        %v756 = vperm.slane %v740, 1
        %v757 = vmul.f32 %v753, %v634
        %v758 = vmul.f32 %v754, %v634
        %v759 = vmul.f32 %v755, %v634
        %v760 = vmul.f32 %v756, %v634
        %v761 = vadd.f32 %v749, %v757
        %v762 = vadd.f32 %v750, %v758
        %v763 = vadd.f32 %v751, %v759
        %v764 = vadd.f32 %v752, %v760
        %v765 = vperm.slane %v737, 2
        %v766 = vperm.slane %v738, 2
        %v767 = vperm.slane %v739, 2
        %v768 = vperm.slane %v740, 2
        %v769 = vmul.f32 %v765, %v635
        %v770 = vmul.f32 %v766, %v635
        %v771 = vmul.f32 %v767, %v635
        %v772 = vmul.f32 %v768, %v635
        %v773 = vadd.f32 %v761, %v769
        %v774 = vadd.f32 %v762, %v770
        %v775 = vadd.f32 %v763, %v771
        %v776 = vadd.f32 %v764, %v772
        %v777 = vperm.slane %v737, 3
        %v778 = vperm.slane %v738, 3
        %v779 = vperm.slane %v739, 3
        %v780 = vperm.slane %v740, 3
        %v781 = vmul.f32 %v777, %v636
        %v782 = vmul.f32 %v778, %v636
        %v783 = vmul.f32 %v779, %v636
        %v784 = vmul.f32 %v780, %v636
        %v785 = vadd.f32 %v773, %v781
        %v786 = vadd.f32 %v774, %v782
        %v787 = vadd.f32 %v775, %v783
        %v788 = vadd.f32 %v776, %v784
        %v789 = vmul.f32 %v785, 0.25
        %v790 = vmul.f32 %v786, 0.25
        %v791 = vmul.f32 %v787, 0.25
        %v792 = vmul.f32 %v788, 0.25
        %v793 = vadd.f32 %v741, %v789
        %v794 = vadd.f32 %v742, %v790
        %v795 = vadd.f32 %v743, %v791
        %v796 = vadd.f32 %v744, %v792
        %v797 = vperm.slane %v789, 0
        %v798 = vperm.slane %v790, 0
        %v799 = vperm.slane %v791, 0
        %v800 = vperm.slane %v792, 0
        %v801 = vmul.f32 %v797, %v633
        %v802 = vmul.f32 %v798, %v633
        %v803 = vmul.f32 %v799, %v633
        %v804 = vmul.f32 %v800, %v633
        %v805 = vperm.slane %v789, 1
        %v806 = vperm.slane %v790, 1
        %v807 = vperm.slane %v791, 1
        %v808 = vperm.slane %v792, 1
        %v809 = vmul.f32 %v805, %v634
        %v810 = vmul.f32 %v806, %v634
        %v811 = vmul.f32 %v807, %v634
        %v812 = vmul.f32 %v808, %v634
        %v813 = vadd.f32 %v801, %v809
        %v814 = vadd.f32 %v802, %v810
        %v815 = vadd.f32 %v803, %v811
        %v816 = vadd.f32 %v804, %v812
        %v817 = vperm.slane %v789, 2
        %v818 = vperm.slane %v790, 2
        %v819 = vperm.slane %v791, 2
        %v820 = vperm.slane %v792, 2
        %v821 = vmul.f32 %v817, %v635
        %v822 = vmul.f32 %v818, %v635
        %v823 = vmul.f32 %v819, %v635
        %v824 = vmul.f32 %v820, %v635
        %v825 = vadd.f32 %v813, %v821
        %v826 = vadd.f32 %v814, %v822
        %v827 = vadd.f32 %v815, %v823
        %v828 = vadd.f32 %v816, %v824
        %v829 = vperm.slane %v789, 3
        %v830 = vperm.slane %v790, 3
        %v831 = vperm.slane %v791, 3
        %v832 = vperm.slane %v792, 3
        %v833 = vmul.f32 %v829, %v636
        %v834 = vmul.f32 %v830, %v636
        %v835 = vmul.f32 %v831, %v636
        %v836 = vmul.f32 %v832, %v636
        %v837 = vadd.f32 %v825, %v833
        %v838 = vadd.f32 %v826, %v834
        %v839 = vadd.f32 %v827, %v835
        %v840 = vadd.f32 %v828, %v836
        %v841 = vmul.f32 %v837, 0.2
        %v842 = vmul.f32 %v838, 0.2
        %v843 = vmul.f32 %v839, 0.2
        %v844 = vmul.f32 %v840, 0.2
        %v845 = vadd.f32 %v793, %v841
        %v846 = vadd.f32 %v794, %v842
        %v847 = vadd.f32 %v795, %v843
        %v848 = vadd.f32 %v796, %v844
        %v849 = vperm.slane %v841, 0
        %v850 = vperm.slane %v842, 0
        %v851 = vperm.slane %v843, 0
        %v852 = vperm.slane %v844, 0
        %v853 = vmul.f32 %v849, %v633
        %v854 = vmul.f32 %v850, %v633
        %v855 = vmul.f32 %v851, %v633
        %v856 = vmul.f32 %v852, %v633
        %v857 = vperm.slane %v841, 1
        %v858 = vperm.slane %v842, 1
        %v859 = vperm.slane %v843, 1
        %v860 = vperm.slane %v844, 1
        %v861 = vmul.f32 %v857, %v634
        %v862 = vmul.f32 %v858, %v634
        %v863 = vmul.f32 %v859, %v634
        %v864 = vmul.f32 %v860, %v634
        %v865 = vadd.f32 %v853, %v861
        %v866 = vadd.f32 %v854, %v862
        %v867 = vadd.f32 %v855, %v863
        %v868 = vadd.f32 %v856, %v864
        %v869 = vperm.slane %v841, 2
        %v870 = vperm.slane %v842, 2
        %v871 = vperm.slane %v843, 2
        %v872 = vperm.slane %v844, 2
        %v873 = vmul.f32 %v869, %v635
        %v874 = vmul.f32 %v870, %v635
        %v875 = vmul.f32 %v871, %v635
        %v876 = vmul.f32 %v872, %v635
        %v877 = vadd.f32 %v865, %v873
        %v878 = vadd.f32 %v866, %v874
        %v879 = vadd.f32 %v867, %v875
        %v880 = vadd.f32 %v868, %v876
        %v881 = vperm.slane %v841, 3
        %v882 = vperm.slane %v842, 3
        %v883 = vperm.slane %v843, 3
        %v884 = vperm.slane %v844, 3
        %v885 = vmul.f32 %v881, %v636
        %v886 = vmul.f32 %v882, %v636
        %v887 = vmul.f32 %v883, %v636
        %v888 = vmul.f32 %v884, %v636
        %v889 = vadd.f32 %v877, %v885
        %v890 = vadd.f32 %v878, %v886
        %v891 = vadd.f32 %v879, %v887
        %v892 = vadd.f32 %v880, %v888
        %v893 = vmul.f32 %v889, 0.16666667
        %v894 = vmul.f32 %v890, 0.16666667
        %v895 = vmul.f32 %v891, 0.16666667
        %v896 = vmul.f32 %v892, 0.16666667
        %v897 = vadd.f32 %v845, %v893
        %v898 = vadd.f32 %v846, %v894
        %v899 = vadd.f32 %v847, %v895
        %v900 = vadd.f32 %v848, %v896
        %v901 = vperm.slane %v893, 0
        %v902 = vperm.slane %v894, 0
        %v903 = vperm.slane %v895, 0
        %v904 = vperm.slane %v896, 0
        %v905 = vmul.f32 %v901, %v633
        %v906 = vmul.f32 %v902, %v633
        %v907 = vmul.f32 %v903, %v633
        %v908 = vmul.f32 %v904, %v633
        %v909 = vperm.slane %v893, 1
        %v910 = vperm.slane %v894, 1
        %v911 = vperm.slane %v895, 1
        %v912 = vperm.slane %v896, 1
        %v913 = vmul.f32 %v909, %v634
        %v914 = vmul.f32 %v910, %v634
        %v915 = vmul.f32 %v911, %v634
        %v916 = vmul.f32 %v912, %v634
        %v917 = vadd.f32 %v905, %v913
        %v918 = vadd.f32 %v906, %v914
        %v919 = vadd.f32 %v907, %v915
        %v920 = vadd.f32 %v908, %v916
        %v921 = vperm.slane %v893, 2
        %v922 = vperm.slane %v894, 2
        %v923 = vperm.slane %v895, 2
        %v924 = vperm.slane %v896, 2
        %v925 = vmul.f32 %v921, %v635
        %v926 = vmul.f32 %v922, %v635
        %v927 = vmul.f32 %v923, %v635
        %v928 = vmul.f32 %v924, %v635
        %v929 = vadd.f32 %v917, %v925
        %v930 = vadd.f32 %v918, %v926
        %v931 = vadd.f32 %v919, %v927
        %v932 = vadd.f32 %v920, %v928
        %v933 = vperm.slane %v893, 3
        %v934 = vperm.slane %v894, 3
        %v935 = vperm.slane %v895, 3
        %v936 = vperm.slane %v896, 3
        %v937 = vmul.f32 %v933, %v636
        %v938 = vmul.f32 %v934, %v636
        %v939 = vmul.f32 %v935, %v636
        %v940 = vmul.f32 %v936, %v636
        %v941 = vadd.f32 %v929, %v937
        %v942 = vadd.f32 %v930, %v938
        %v943 = vadd.f32 %v931, %v939
        %v944 = vadd.f32 %v932, %v940
        %v945 = vmul.f32 %v941, 0.14285715
        %v946 = vmul.f32 %v942, 0.14285715
        %v947 = vmul.f32 %v943, 0.14285715
        %v948 = vmul.f32 %v944, 0.14285715
        %v949 = vadd.f32 %v897, %v945
        %v950 = vadd.f32 %v898, %v946
        %v951 = vadd.f32 %v899, %v947
        %v952 = vadd.f32 %v900, %v948
        %v953 = vperm.slane %v945, 0
        %v954 = vperm.slane %v946, 0
        %v955 = vperm.slane %v947, 0
        %v956 = vperm.slane %v948, 0
        %v957 = vmul.f32 %v953, %v633
        %v958 = vmul.f32 %v954, %v633
        %v959 = vmul.f32 %v955, %v633
        %v960 = vmul.f32 %v956, %v633
        %v961 = vperm.slane %v945, 1
        %v962 = vperm.slane %v946, 1
        %v963 = vperm.slane %v947, 1
        %v964 = vperm.slane %v948, 1
        %v965 = vmul.f32 %v961, %v634
        %v966 = vmul.f32 %v962, %v634
        %v967 = vmul.f32 %v963, %v634
        %v968 = vmul.f32 %v964, %v634
        %v969 = vadd.f32 %v957, %v965
        %v970 = vadd.f32 %v958, %v966
        %v971 = vadd.f32 %v959, %v967
        %v972 = vadd.f32 %v960, %v968
        %v973 = vperm.slane %v945, 2
        %v974 = vperm.slane %v946, 2
        %v975 = vperm.slane %v947, 2
        %v976 = vperm.slane %v948, 2
        %v977 = vmul.f32 %v973, %v635
        %v978 = vmul.f32 %v974, %v635
        %v979 = vmul.f32 %v975, %v635
        %v980 = vmul.f32 %v976, %v635
        %v981 = vadd.f32 %v969, %v977
        %v982 = vadd.f32 %v970, %v978
        %v983 = vadd.f32 %v971, %v979
        %v984 = vadd.f32 %v972, %v980
        %v985 = vperm.slane %v945, 3
        %v986 = vperm.slane %v946, 3
        %v987 = vperm.slane %v947, 3
        %v988 = vperm.slane %v948, 3
        %v989 = vmul.f32 %v985, %v636
        %v990 = vmul.f32 %v986, %v636
        %v991 = vmul.f32 %v987, %v636
        %v992 = vmul.f32 %v988, %v636
        %v993 = vadd.f32 %v981, %v989
        %v994 = vadd.f32 %v982, %v990
        %v995 = vadd.f32 %v983, %v991
        %v996 = vadd.f32 %v984, %v992
        %v997 = vmul.f32 %v993, 0.125
        %v998 = vmul.f32 %v994, 0.125
        %v999 = vmul.f32 %v995, 0.125
        %v1000 = vmul.f32 %v996, 0.125
        %v1001 = vadd.f32 %v949, %v997
        %v1002 = vadd.f32 %v950, %v998
        %v1003 = vadd.f32 %v951, %v999
        %v1004 = vadd.f32 %v952, %v1000
        %v1005 = vperm.slane %v1001, 0
        %v1006 = vperm.slane %v1002, 0
        %v1007 = vperm.slane %v1003, 0
        %v1008 = vperm.slane %v1004, 0
        %v1009 = vmul.f32 %v1005, %v1001
        %v1010 = vmul.f32 %v1006, %v1001
        %v1011 = vmul.f32 %v1007, %v1001
        %v1012 = vmul.f32 %v1008, %v1001
        %v1013 = vperm.slane %v1001, 1
        %v1014 = vperm.slane %v1002, 1
        %v1015 = vperm.slane %v1003, 1
        %v1016 = vperm.slane %v1004, 1
        %v1017 = vmul.f32 %v1013, %v1002
        %v1018 = vmul.f32 %v1014, %v1002
        %v1019 = vmul.f32 %v1015, %v1002
        %v1020 = vmul.f32 %v1016, %v1002
        %v1021 = vadd.f32 %v1009, %v1017
        %v1022 = vadd.f32 %v1010, %v1018
        %v1023 = vadd.f32 %v1011, %v1019
        %v1024 = vadd.f32 %v1012, %v1020
        %v1025 = vperm.slane %v1001, 2
        %v1026 = vperm.slane %v1002, 2
        %v1027 = vperm.slane %v1003, 2
        %v1028 = vperm.slane %v1004, 2
        %v1029 = vmul.f32 %v1025, %v1003
        %v1030 = vmul.f32 %v1026, %v1003
        %v1031 = vmul.f32 %v1027, %v1003
        %v1032 = vmul.f32 %v1028, %v1003
        %v1033 = vadd.f32 %v1021, %v1029
        %v1034 = vadd.f32 %v1022, %v1030
        %v1035 = vadd.f32 %v1023, %v1031
        %v1036 = vadd.f32 %v1024, %v1032
        %v1037 = vperm.slane %v1001, 3
        %v1038 = vperm.slane %v1002, 3
        %v1039 = vperm.slane %v1003, 3
        %v1040 = vperm.slane %v1004, 3
        %v1041 = vmul.f32 %v1037, %v1004
        %v1042 = vmul.f32 %v1038, %v1004
        %v1043 = vmul.f32 %v1039, %v1004
        %v1044 = vmul.f32 %v1040, %v1004
        %v1045 = vadd.f32 %v1033, %v1041
        %v1046 = vadd.f32 %v1034, %v1042
        %v1047 = vadd.f32 %v1035, %v1043
        %v1048 = vadd.f32 %v1036, %v1044
        %v1049 = vperm.slane %v1045, 0
        %v1050 = vperm.slane %v1046, 0
        %v1051 = vperm.slane %v1047, 0
        %v1052 = vperm.slane %v1048, 0
        %v1053 = vmul.f32 %v1049, %v1045
        %v1054 = vmul.f32 %v1050, %v1045
        %v1055 = vmul.f32 %v1051, %v1045
        %v1056 = vmul.f32 %v1052, %v1045
        %v1057 = vperm.slane %v1045, 1
        %v1058 = vperm.slane %v1046, 1
        %v1059 = vperm.slane %v1047, 1
        %v1060 = vperm.slane %v1048, 1
        %v1061 = vmul.f32 %v1057, %v1046
        %v1062 = vmul.f32 %v1058, %v1046
        %v1063 = vmul.f32 %v1059, %v1046
        %v1064 = vmul.f32 %v1060, %v1046
        %v1065 = vadd.f32 %v1053, %v1061
        %v1066 = vadd.f32 %v1054, %v1062
        %v1067 = vadd.f32 %v1055, %v1063
        %v1068 = vadd.f32 %v1056, %v1064
        %v1069 = vperm.slane %v1045, 2
        %v1070 = vperm.slane %v1046, 2
        %v1071 = vperm.slane %v1047, 2
        %v1072 = vperm.slane %v1048, 2
        %v1073 = vmul.f32 %v1069, %v1047
        %v1074 = vmul.f32 %v1070, %v1047
        %v1075 = vmul.f32 %v1071, %v1047
        %v1076 = vmul.f32 %v1072, %v1047
        %v1077 = vadd.f32 %v1065, %v1073
        %v1078 = vadd.f32 %v1066, %v1074
        %v1079 = vadd.f32 %v1067, %v1075
        %v1080 = vadd.f32 %v1068, %v1076
        %v1081 = vperm.slane %v1045, 3
        %v1082 = vperm.slane %v1046, 3
        %v1083 = vperm.slane %v1047, 3
        %v1084 = vperm.slane %v1048, 3
        %v1085 = vmul.f32 %v1081, %v1048
        %v1086 = vmul.f32 %v1082, %v1048
        %v1087 = vmul.f32 %v1083, %v1048
        %v1088 = vmul.f32 %v1084, %v1048
        %v1089 = vadd.f32 %v1077, %v1085
        %v1090 = vadd.f32 %v1078, %v1086
        %v1091 = vadd.f32 %v1079, %v1087
        %v1092 = vadd.f32 %v1080, %v1088
        %v1093 = vperm.slane %v1089, 0
        %v1094 = vperm.slane %v1090, 0
        %v1095 = vperm.slane %v1091, 0
        %v1096 = vperm.slane %v1092, 0
        %v1097 = vmul.f32 %v1093, %v1089
        %v1098 = vmul.f32 %v1094, %v1089
        %v1099 = vmul.f32 %v1095, %v1089
        %v1100 = vmul.f32 %v1096, %v1089
        %v1101 = vperm.slane %v1089, 1
        %v1102 = vperm.slane %v1090, 1
        %v1103 = vperm.slane %v1091, 1
        %v1104 = vperm.slane %v1092, 1
        %v1105 = vmul.f32 %v1101, %v1090
        %v1106 = vmul.f32 %v1102, %v1090
        %v1107 = vmul.f32 %v1103, %v1090
        %v1108 = vmul.f32 %v1104, %v1090
        %v1109 = vadd.f32 %v1097, %v1105
        %v1110 = vadd.f32 %v1098, %v1106
        %v1111 = vadd.f32 %v1099, %v1107
        %v1112 = vadd.f32 %v1100, %v1108
        %v1113 = vperm.slane %v1089, 2
        %v1114 = vperm.slane %v1090, 2
        %v1115 = vperm.slane %v1091, 2
        %v1116 = vperm.slane %v1092, 2
        %v1117 = vmul.f32 %v1113, %v1091
        %v1118 = vmul.f32 %v1114, %v1091
        %v1119 = vmul.f32 %v1115, %v1091
        %v1120 = vmul.f32 %v1116, %v1091
        %v1121 = vadd.f32 %v1109, %v1117
        %v1122 = vadd.f32 %v1110, %v1118
        %v1123 = vadd.f32 %v1111, %v1119
        %v1124 = vadd.f32 %v1112, %v1120
        %v1125 = vperm.slane %v1089, 3
        %v1126 = vperm.slane %v1090, 3
        %v1127 = vperm.slane %v1091, 3
        %v1128 = vperm.slane %v1092, 3
        %v1129 = vmul.f32 %v1125, %v1092
        %v1130 = vmul.f32 %v1126, %v1092
        %v1131 = vmul.f32 %v1127, %v1092
        %v1132 = vmul.f32 %v1128, %v1092
        %v1133 = vadd.f32 %v1121, %v1129
        %v1134 = vadd.f32 %v1122, %v1130
        %v1135 = vadd.f32 %v1123, %v1131
        %v1136 = vadd.f32 %v1124, %v1132
        %v1137 = vperm.slane %v1133, 0
        %v1138 = vperm.slane %v1134, 0
        %v1139 = vperm.slane %v1135, 0
        %v1140 = vperm.slane %v1136, 0
        %v1141 = vmul.f32 %v1137, %v1133
        %v1142 = vmul.f32 %v1138, %v1133
        %v1143 = vmul.f32 %v1139, %v1133
        %v1144 = vmul.f32 %v1140, %v1133
        %v1145 = vperm.slane %v1133, 1
        %v1146 = vperm.slane %v1134, 1
        %v1147 = vperm.slane %v1135, 1
        %v1148 = vperm.slane %v1136, 1
        %v1149 = vmul.f32 %v1145, %v1134
        %v1150 = vmul.f32 %v1146, %v1134
        %v1151 = vmul.f32 %v1147, %v1134
        %v1152 = vmul.f32 %v1148, %v1134
        %v1153 = vadd.f32 %v1141, %v1149
        %v1154 = vadd.f32 %v1142, %v1150
        %v1155 = vadd.f32 %v1143, %v1151
        %v1156 = vadd.f32 %v1144, %v1152
        %v1157 = vperm.slane %v1133, 2
        %v1158 = vperm.slane %v1134, 2
        %v1159 = vperm.slane %v1135, 2
        %v1160 = vperm.slane %v1136, 2
        %v1161 = vmul.f32 %v1157, %v1135
        %v1162 = vmul.f32 %v1158, %v1135
        %v1163 = vmul.f32 %v1159, %v1135
        %v1164 = vmul.f32 %v1160, %v1135
        %v1165 = vadd.f32 %v1153, %v1161
        %v1166 = vadd.f32 %v1154, %v1162
        %v1167 = vadd.f32 %v1155, %v1163
        %v1168 = vadd.f32 %v1156, %v1164
        %v1169 = vperm.slane %v1133, 3
        %v1170 = vperm.slane %v1134, 3
        %v1171 = vperm.slane %v1135, 3
        %v1172 = vperm.slane %v1136, 3
        %v1173 = vmul.f32 %v1169, %v1136
        %v1174 = vmul.f32 %v1170, %v1136
        %v1175 = vmul.f32 %v1171, %v1136
        %v1176 = vmul.f32 %v1172, %v1136
        %v1177 = vadd.f32 %v1165, %v1173
        %v1178 = vadd.f32 %v1166, %v1174
        %v1179 = vadd.f32 %v1167, %v1175
        %v1180 = vadd.f32 %v1168, %v1176
        %v1181 = vperm.slane %v1177, 0
        %v1182 = vperm.slane %v1178, 0
        %v1183 = vperm.slane %v1179, 0
        %v1184 = vperm.slane %v1180, 0
        %v1185 = vmul.f32 %v1181, %v1177
        %v1186 = vmul.f32 %v1182, %v1177
        %v1187 = vmul.f32 %v1183, %v1177
        %v1188 = vmul.f32 %v1184, %v1177
        %v1189 = vperm.slane %v1177, 1
        %v1190 = vperm.slane %v1178, 1
        %v1191 = vperm.slane %v1179, 1
        %v1192 = vperm.slane %v1180, 1
        %v1193 = vmul.f32 %v1189, %v1178
        %v1194 = vmul.f32 %v1190, %v1178
        %v1195 = vmul.f32 %v1191, %v1178
        %v1196 = vmul.f32 %v1192, %v1178
        %v1197 = vadd.f32 %v1185, %v1193
        %v1198 = vadd.f32 %v1186, %v1194
        %v1199 = vadd.f32 %v1187, %v1195
        %v1200 = vadd.f32 %v1188, %v1196
        %v1201 = vperm.slane %v1177, 2
        %v1202 = vperm.slane %v1178, 2
        %v1203 = vperm.slane %v1179, 2
        %v1204 = vperm.slane %v1180, 2
        %v1205 = vmul.f32 %v1201, %v1179
        %v1206 = vmul.f32 %v1202, %v1179
        %v1207 = vmul.f32 %v1203, %v1179
        %v1208 = vmul.f32 %v1204, %v1179
        %v1209 = vadd.f32 %v1197, %v1205
        %v1210 = vadd.f32 %v1198, %v1206
        %v1211 = vadd.f32 %v1199, %v1207
        %v1212 = vadd.f32 %v1200, %v1208
        %v1213 = vperm.slane %v1177, 3
        %v1214 = vperm.slane %v1178, 3
        %v1215 = vperm.slane %v1179, 3
        %v1216 = vperm.slane %v1180, 3
        %v1217 = vmul.f32 %v1213, %v1180
        %v1218 = vmul.f32 %v1214, %v1180
        %v1219 = vmul.f32 %v1215, %v1180
        %v1220 = vmul.f32 %v1216, %v1180
        %v1221 = vadd.f32 %v1209, %v1217
        %v1222 = vadd.f32 %v1210, %v1218
        %v1223 = vadd.f32 %v1211, %v1219
        %v1224 = vadd.f32 %v1212, %v1220
        %v1225 = vperm.slane %v1221, 0
        %v1226 = vperm.slane %v1222, 0
        %v1227 = vperm.slane %v1223, 0
        %v1228 = vperm.slane %v1224, 0
        %v1229 = vmul.f32 %v1225, %v1221
        %v1230 = vmul.f32 %v1226, %v1221
        %v1231 = vmul.f32 %v1227, %v1221
        %v1232 = vmul.f32 %v1228, %v1221
        %v1233 = vperm.slane %v1221, 1
        %v1234 = vperm.slane %v1222, 1
        %v1235 = vperm.slane %v1223, 1
        %v1236 = vperm.slane %v1224, 1
        %v1237 = vmul.f32 %v1233, %v1222
        %v1238 = vmul.f32 %v1234, %v1222
        %v1239 = vmul.f32 %v1235, %v1222
        %v1240 = vmul.f32 %v1236, %v1222
        %v1241 = vadd.f32 %v1229, %v1237
        %v1242 = vadd.f32 %v1230, %v1238
        %v1243 = vadd.f32 %v1231, %v1239
        %v1244 = vadd.f32 %v1232, %v1240
        %v1245 = vperm.slane %v1221, 2
        %v1246 = vperm.slane %v1222, 2
        %v1247 = vperm.slane %v1223, 2
        %v1248 = vperm.slane %v1224, 2
        %v1249 = vmul.f32 %v1245, %v1223
        %v1250 = vmul.f32 %v1246, %v1223
        %v1251 = vmul.f32 %v1247, %v1223
        %v1252 = vmul.f32 %v1248, %v1223
        %v1253 = vadd.f32 %v1241, %v1249
        %v1254 = vadd.f32 %v1242, %v1250
        %v1255 = vadd.f32 %v1243, %v1251
        %v1256 = vadd.f32 %v1244, %v1252
        %v1257 = vperm.slane %v1221, 3
        %v1258 = vperm.slane %v1222, 3
        %v1259 = vperm.slane %v1223, 3
        %v1260 = vperm.slane %v1224, 3
        %v1261 = vmul.f32 %v1257, %v1224
        %v1262 = vmul.f32 %v1258, %v1224
        %v1263 = vmul.f32 %v1259, %v1224
        %v1264 = vmul.f32 %v1260, %v1224
        %v1265 = vadd.f32 %v1253, %v1261
        %v1266 = vadd.f32 %v1254, %v1262
        %v1267 = vadd.f32 %v1255, %v1263
        %v1268 = vadd.f32 %v1256, %v1264
        %1269 = vst [vmem:[%s267] sm:$0xf] %v1265
        %1270 = vst [vmem:[%s267 + $0x4] sm:$0xf] %v1266
        %1271 = vst [vmem:[%s267 + $0x8] sm:$0xf] %v1267
        %1272 = vst [vmem:[%s267 + $0xc] sm:$0xf] %v1268
        %s1273 = sand.u32 %s181, 1
        %s1274 = scalar_lea.sflag [#allocation3], %s1273
        %s1275 = sand.u32 %s181, 1
        %s1276 = smul.addr %s1275, 16
        %s1277 = scalar_lea.vmem [#allocation2], %s1276
        // Predicated region
        $region49: #{tpu_custom_call.1} parent=47 // pred_check
          %p1278 = pneg %p191
        $region50: #{tpu_custom_call.1} parent=47 // pred_check_branch
          %1280 = sbr.rel (%p1278) target = $region52
        $region51: #{tpu_custom_call.1} parent=47 // pred_region
          %1282 = vsyncadd %s1274, 0
          %s1283 = smul.addr %s21, 8
          %s1284 = scalar_lea.hbm %s7, %s1283
          %s1285 = sshll.u32 %s1277, 4
          %s1286 = int_to_ptr.vmem [resolvable:$true] %s1285
          %s1287 = sshll.u32 %s1284, 4
          %s1288 = int_to_ptr.hbm [resolvable:$true] %s1287
          %1293 = dma.vmem_to_hbm [thread:$0]  %s1286, 256, %s1288, %s1274, 128, 256, 8
        $region52: #{tpu_custom_call.1} parent=47 // pred_fallthru
          _
      $region48: #{tpu_custom_call.1} parent=5 // pred_fallthru
        _
      %p1294 = scmp.le.s32.totalorder 2, %s16
      // Predicated region
      $region53: #{tpu_custom_call.1} parent=5 // pred_check
        %p1295 = pneg %p1294
      $region54: #{tpu_custom_call.1} parent=5 // pred_check_branch
        %1297 = sbr.rel (%p1295) target = $region56
      $region55: #{tpu_custom_call.1} parent=5 // pred_region
        %s1298 = ssub.s32 %s16, 2
        // Predicated region
        $region57: #{tpu_custom_call.1} parent=55 // pred_check
          %p1299 = pneg %p197
        $region58: #{tpu_custom_call.1} parent=55 // pred_check_branch
          %1301 = sbr.rel (%p1299) target = $region60
        $region59: #{tpu_custom_call.1} parent=55 // pred_region
          %s1302 = sand.u32 %s182, 1
          %s1303 = scalar_lea.sflag [#allocation3], %s1302
          %s1304 = sand.u32 %s182, 1
          %s1305 = smul.addr %s1304, 16
          %s1306 = scalar_lea.vmem [#allocation2], %s1305
          %1308 = dma.done %s1303, 256
        $region60: #{tpu_custom_call.1} parent=55 // pred_fallthru
          _
      $region56: #{tpu_custom_call.1} parent=5 // pred_fallthru
        _
    $region6: #{tpu_custom_call.1} parent=1 // loop_footer
      %s20 = sadd.s32 1, %s16
    $region7: #{tpu_custom_call.1} parent=1 // loop_footer_branch
      %15 = sbr.rel target = $region3
    $region8: #{tpu_custom_call.1} parent=1 // loop_exit
      _
    %1309 = vsyncpa [#allocation3], 1
    %s1310 = scalar_lea.sflag [#allocation3], 1
    %1311 = vsyncpa %s1310, 1

</llo_original>
